<compile_context>
chip_gen: v7x
topology: tpu7x:2x2x1
jax: 0.10.0
libtpu: 0.0.40
codegen_flags: <defaults>
</compile_context>

<pallas_src>
import jax
import jax.numpy as jnp
from jax.experimental import pallas as pl
from jax.experimental.pallas import tpu as pltpu

SHIFT = 1  # deterministic stand-in for (random.random() > 0.5) * 2 - 1
# TODO(synk): the torch module draws shift_direction randomly at __init__; fixed to +1 here.


def _kernel(xb_ref, xr_ref, w2_ref, w1_ref, o_ref):
    # xb_ref : (384, 196)  base im2col, rows = (c, a), cols = (p, q)   [q-roll already folded in]
    # xr_ref : (384, 196)  same data with the p axis cyclically rolled by SHIFT
    # w2_ref : (256, 384)  W2 flattened over (c, a)
    # w1_ref : (256, 2)    col 0 = coefficient of the rolled term, col 1 = of the base term
    # o_ref  : (256, 196)  out[i, p*14 + q]
    w = w2_ref[...]
    wa = w1_ref[:, 0:1]          # (256, 1) -> broadcasts over the K columns
    wb = w1_ref[:, 1:2]
    acc = jnp.dot(w * wa, xr_ref[...], preferred_element_type=jnp.float32)
    acc = acc + jnp.dot(w * wb, xb_ref[...], preferred_element_type=jnp.float32)
    o_ref[...] = acc


def forward(x, w1, w2):
    """x: (1, 128, 14, 14) f32 NCHW; w1: (256, 2); w2: (256, 3, 128). Returns (1, 256, 14, 14)."""
    # Fold the final q-roll into the input (conv does not mix the H axis).
    xs = jnp.roll(x[0], SHIFT, axis=1)                    # (128, 14, 14)  [a, q, w]
    xp = jnp.pad(xs, ((0, 0), (0, 0), (1, 1)))            # (128, 14, 16)  zero-pad W

    # base4[c, a, p, q] = xs[a, q, p + c - 1]  (zero-padded)
    base4 = jnp.stack(
        [jnp.transpose(xp[:, :, c:c + 14], (0, 2, 1)) for c in range(3)], axis=0
    )                                                     # (3, 128, 14, 14)
    # Rolled copy: roll4[c, a, p, q] = base4[c, a, (p - SHIFT) % 14, q]
    roll4 = jnp.roll(base4, SHIFT, axis=2)

    xb = base4.reshape(3 * 128, 14 * 14)                  # (384, 196)
    xr = roll4.reshape(3 * 128, 14 * 14)                  # (384, 196)
    w2f = w2.reshape(256, 3 * 128)                        # (256, 384), natural layout of W2

    # Per-output-channel coefficients: [rolled-term coeff, base-term coeff]
    if SHIFT == 1:
        w1sel = jnp.stack([w1[:, 1], w1[:, 0]], axis=1)   # (256, 2)
    else:
        w1sel = jnp.stack([w1[:, 0], w1[:, 1]], axis=1)

    flops = 2 * 2 * 256 * 384 * 196
    bytes_accessed = 4 * (2 * 384 * 196 + 256 * 384 + 256 * 2 + 256 * 196)

    out2d = pl.pallas_call(
        _kernel,
        out_shape=jax.ShapeDtypeStruct((256, 196), jnp.float32),
        in_specs=[
            pl.BlockSpec(memory_space=pltpu.MemorySpace.VMEM),
            pl.BlockSpec(memory_space=pltpu.MemorySpace.VMEM),
            pl.BlockSpec(memory_space=pltpu.MemorySpace.VMEM),
            pl.BlockSpec(memory_space=pltpu.MemorySpace.VMEM),
        ],
        out_specs=pl.BlockSpec(memory_space=pltpu.MemorySpace.VMEM),
        cost_estimate=pl.CostEstimate(
            flops=flops, transcendentals=0, bytes_accessed=bytes_accessed
        ),
    )(xb, xr, w2f, w1sel)

    # (256, 196) row-major -> (1, 256, 14, 14): contiguous reshape, no transpose.
    return out2d.reshape(1, 256, 14, 14)


def reference(x, w1, w2):
    """Pure-JAX mirror of the torch forward (for validation)."""
    t3 = jnp.einsum('ikjl->ilkj', x).reshape(1, 1, 14, 1792)
    pad = jnp.pad(t3, ((0, 0), (0, 0), (1, 1), (0, 0)))
    t3u = jnp.stack([pad[:, 0, c:c + 14, :] for c in range(3)], axis=1)  # unfold (3,1), pad (1,0)
    t3r = t3u.reshape(1, 3, 14, 128, 14)
    t4 = jnp.einsum('lknjm,ikj->linm', t3r, w2)
    t5 = jnp.einsum('kiml,ij->kimjl', t4, w1)
    t6 = t5.reshape(1, 256, 28, 14)
    t6 = jnp.roll(t6, SHIFT, axis=2)
    t6 = t6.reshape(1, 256, 14, 2, 14).sum(axis=3)
    return jnp.roll(t6, SHIFT, axis=3)


if __name__ == "__main__":
    key = jax.random.PRNGKey(0)
    kx, k1, k2 = jax.random.split(key, 3)
    # Shapes are hard-coded by the module's reshapes: x must be (1, 128, 14, 14).
    x = jax.random.normal(kx, (1, 128, 14, 14), jnp.float32)
    w1 = jax.random.normal(k1, (256, 2), jnp.float32)       # weights[0]
    w2 = jax.random.normal(k2, (256, 3, 128), jnp.float32)  # weights[1]

    y = jax.jit(forward)(x, w1, w2)
    jax.block_until_ready(y)
    assert y.shape == (1, 256, 14, 14), y.shape

    ref = reference(x, w1, w2)
    err = float(jnp.max(jnp.abs(y - ref)))
    scale = float(jnp.max(jnp.abs(ref))) + 1.0
    assert err <= 1e-2 * scale, (err, scale)

    print("KERNEL_OK")
</pallas_src>

<mosaic_0001>
module attributes {stable_mosaic.version = 11 : i64} {
  func.func @_kernel(%arg0: memref<384x196xf32, #tpu.memory_space<vmem>>, %arg1: memref<384x196xf32, #tpu.memory_space<vmem>>, %arg2: memref<256x384xf32, #tpu.memory_space<vmem>>, %arg3: memref<256x2xf32, #tpu.memory_space<vmem>>, %arg4: memref<256x196xf32, #tpu.memory_space<vmem>>) attributes {dimension_semantics = [], scalar_prefetch = 0 : i64, scratch_operands = 0 : i64, tpu.core_type = #tpu.core_type<tc>} {
    %c0 = arith.constant 0 : index
    %c0_0 = arith.constant 0 : index
    %0 = vector.load %arg2[%c0, %c0_0] : memref<256x384xf32, #tpu.memory_space<vmem>>, vector<256x384xf32>
    %c0_1 = arith.constant 0 : index
    %c0_2 = arith.constant 0 : index
    %1 = vector.load %arg3[%c0_1, %c0_2] : memref<256x2xf32, #tpu.memory_space<vmem>>, vector<256x1xf32>
    %c0_3 = arith.constant 0 : index
    %c1 = arith.constant 1 : index
    %2 = vector.load %arg3[%c0_3, %c1] : memref<256x2xf32, #tpu.memory_space<vmem>>, vector<256x1xf32>
    %3 = vector.broadcast %1 : vector<256x1xf32> to vector<256x384xf32>
    %4 = arith.mulf %0, %3 : vector<256x384xf32>
    %c0_4 = arith.constant 0 : index
    %c0_5 = arith.constant 0 : index
    %5 = vector.load %arg1[%c0_4, %c0_5] : memref<384x196xf32, #tpu.memory_space<vmem>>, vector<384x196xf32>
    %cst = arith.constant dense<0.000000e+00> : vector<256x196xf32>
    %6 = tpu.matmul %4, %5, %cst {dimension_numbers = #tpu.dot_dimension_numbers<[1], [0], [0], [1], [0, 0, 1, 1], [], []>} : vector<256x384xf32>, vector<384x196xf32>, vector<256x196xf32> -> vector<256x196xf32>
    %7 = vector.broadcast %2 : vector<256x1xf32> to vector<256x384xf32>
    %8 = arith.mulf %0, %7 : vector<256x384xf32>
    %c0_6 = arith.constant 0 : index
    %c0_7 = arith.constant 0 : index
    %9 = vector.load %arg0[%c0_6, %c0_7] : memref<384x196xf32, #tpu.memory_space<vmem>>, vector<384x196xf32>
    %cst_8 = arith.constant dense<0.000000e+00> : vector<256x196xf32>
    %10 = tpu.matmul %8, %9, %cst_8 {dimension_numbers = #tpu.dot_dimension_numbers<[1], [0], [0], [1], [0, 0, 1, 1], [], []>} : vector<256x384xf32>, vector<384x196xf32>, vector<256x196xf32> -> vector<256x196xf32>
    %11 = arith.addf %6, %10 : vector<256x196xf32>
    %c0_9 = arith.constant 0 : index
    %c0_10 = arith.constant 0 : index
    %12 = vector.load %arg4[%c0_9, %c0_10] : memref<256x196xf32, #tpu.memory_space<vmem>>, vector<256x196xf32>
    tpu.vector_store %arg4[%c0_9, %c0_10], %11 {strides = array<i32>} : memref<256x196xf32, #tpu.memory_space<vmem>>, vector<256x196xf32>,
    return
  }
}

</mosaic_0001>

<llo_original>
// kernel: forward.1
$region0: #{forward.1}
  #allocation0 [shape = 'u32[]', space=smem, size = 0x4, offset = 0x4, fixed_abs, tag = 'smem constant byte address 0x4 - core index']
  #allocation1 [shape = 'u32[144,128]{1,0:T(1,128)}', space=vmem, size = 0x12000, scoped, tag = 'internal scratch']
  %s0 = inlined_call_operand.vmem [shape: f32[384,196], index: 0, kind: input, shape index: {}]
  %s1 = inlined_call_operand.vmem [shape: f32[384,196], index: 1, kind: input, shape index: {}]
  %s2 = inlined_call_operand.vmem [shape: f32[256,384], index: 2, kind: input, shape index: {}]
  %s3 = inlined_call_operand.vmem [shape: f32[256,2], index: 3, kind: input, shape index: {}]
  %s4 = inlined_call_operand.vmem [shape: f32[256,196], index: 4, kind: output, shape index: {}]
  %s5 = sld [smem:[#allocation0]]
  $region26: #{forward.1} parent=0
    _
  %s7 = ssub.s32 1, %s5
  %s8 = scalar_select 0, %s7, %s5
  // Predicated region
  $region2: #{forward.1} parent=0 // pred_check
    _
  $region3: #{forward.1} parent=0 // pred_check_branch
    %10 = sbr.rel (0) target = $region5
  $region4: #{forward.1} parent=0 // pred_region
    _
  $region5: #{forward.1} parent=0 // pred_fallthru
    _
  // Predicated region
  $region6: #{forward.1} parent=0 // pred_check
    _
  $region7: #{forward.1} parent=0 // pred_check_branch
    %12 = sbr.rel (0) target = $region9
  $region8: #{forward.1} parent=0 // pred_region
    _
  $region9: #{forward.1} parent=0 // pred_fallthru
    _
  // Predicated region
  $region10: #{forward.1} parent=0 // pred_check
    _
  $region11: #{forward.1} parent=0 // pred_check_branch
    %14 = sbr.rel (0) target = $region13
  $region12: #{forward.1} parent=0 // pred_region
    _
  $region13: #{forward.1} parent=0 // pred_fallthru
    _
  // Predicated region
  $region14: #{forward.1} parent=0 // pred_check
    _
  $region15: #{forward.1} parent=0 // pred_check_branch
    %16 = sbr.rel (0) target = $region17
  $region16: #{forward.1} parent=0 // pred_region
    _
  $region17: #{forward.1} parent=0 // pred_fallthru
    _
  %v17 = vld [vmem:[%s2] sm:$0xff]
  %v18 = vld [vmem:[%s2 + $0x8] sm:$0xff]
  %v19 = vld [vmem:[%s2 + $0x10] sm:$0xff]
  %v20 = vld [vmem:[%s2 + $0x18] sm:$0xff]
  %v21 = vld [vmem:[%s2 + $0x20] sm:$0xff]
  %v22 = vld [vmem:[%s2 + $0x28] sm:$0xff]
  %v23 = vld [vmem:[%s2 + $0x30] sm:$0xff]
  %v24 = vld [vmem:[%s2 + $0x38] sm:$0xff]
  %v25 = vld [vmem:[%s2 + $0x40] sm:$0xff]
  %v26 = vld [vmem:[%s2 + $0x48] sm:$0xff]
  %v27 = vld [vmem:[%s2 + $0x50] sm:$0xff]
  %v28 = vld [vmem:[%s2 + $0x58] sm:$0xff]
  %v29 = vld [vmem:[%s2 + $0x60] sm:$0xff]
  %v30 = vld [vmem:[%s2 + $0x68] sm:$0xff]
  %v31 = vld [vmem:[%s2 + $0x70] sm:$0xff]
  %v32 = vld [vmem:[%s2 + $0x78] sm:$0xff]
  %v33 = vld [vmem:[%s2 + $0x80] sm:$0xff]
  %v34 = vld [vmem:[%s2 + $0x88] sm:$0xff]
  %v35 = vld [vmem:[%s2 + $0x90] sm:$0xff]
  %v36 = vld [vmem:[%s2 + $0x98] sm:$0xff]
  %v37 = vld [vmem:[%s2 + $0xa0] sm:$0xff]
  %v38 = vld [vmem:[%s2 + $0xa8] sm:$0xff]
  %v39 = vld [vmem:[%s2 + $0xb0] sm:$0xff]
  %v40 = vld [vmem:[%s2 + $0xb8] sm:$0xff]
  %v41 = vld [vmem:[%s2 + $0xc0] sm:$0xff]
  %v42 = vld [vmem:[%s2 + $0xc8] sm:$0xff]
  %v43 = vld [vmem:[%s2 + $0xd0] sm:$0xff]
  %v44 = vld [vmem:[%s2 + $0xd8] sm:$0xff]
  %v45 = vld [vmem:[%s2 + $0xe0] sm:$0xff]
  %v46 = vld [vmem:[%s2 + $0xe8] sm:$0xff]
  %v47 = vld [vmem:[%s2 + $0xf0] sm:$0xff]
  %v48 = vld [vmem:[%s2 + $0xf8] sm:$0xff]
  %v49 = vld [vmem:[%s2 + $0x100] sm:$0xff]
  %v50 = vld [vmem:[%s2 + $0x108] sm:$0xff]
  %v51 = vld [vmem:[%s2 + $0x110] sm:$0xff]
  %v52 = vld [vmem:[%s2 + $0x118] sm:$0xff]
  %v53 = vld [vmem:[%s2 + $0x120] sm:$0xff]
  %v54 = vld [vmem:[%s2 + $0x128] sm:$0xff]
  %v55 = vld [vmem:[%s2 + $0x130] sm:$0xff]
  %v56 = vld [vmem:[%s2 + $0x138] sm:$0xff]
  %v57 = vld [vmem:[%s2 + $0x140] sm:$0xff]
  %v58 = vld [vmem:[%s2 + $0x148] sm:$0xff]
  %v59 = vld [vmem:[%s2 + $0x150] sm:$0xff]
  %v60 = vld [vmem:[%s2 + $0x158] sm:$0xff]
  %v61 = vld [vmem:[%s2 + $0x160] sm:$0xff]
  %v62 = vld [vmem:[%s2 + $0x168] sm:$0xff]
  %v63 = vld [vmem:[%s2 + $0x170] sm:$0xff]
  %v64 = vld [vmem:[%s2 + $0x178] sm:$0xff]
  %v65 = vld [vmem:[%s2 + $0x180] sm:$0xff]
  %v66 = vld [vmem:[%s2 + $0x188] sm:$0xff]
  %v67 = vld [vmem:[%s2 + $0x190] sm:$0xff]
  %v68 = vld [vmem:[%s2 + $0x198] sm:$0xff]
  %v69 = vld [vmem:[%s2 + $0x1a0] sm:$0xff]
  %v70 = vld [vmem:[%s2 + $0x1a8] sm:$0xff]
  %v71 = vld [vmem:[%s2 + $0x1b0] sm:$0xff]
  %v72 = vld [vmem:[%s2 + $0x1b8] sm:$0xff]
  %v73 = vld [vmem:[%s2 + $0x1c0] sm:$0xff]
  %v74 = vld [vmem:[%s2 + $0x1c8] sm:$0xff]
  %v75 = vld [vmem:[%s2 + $0x1d0] sm:$0xff]
  %v76 = vld [vmem:[%s2 + $0x1d8] sm:$0xff]
  %v77 = vld [vmem:[%s2 + $0x1e0] sm:$0xff]
  %v78 = vld [vmem:[%s2 + $0x1e8] sm:$0xff]
  %v79 = vld [vmem:[%s2 + $0x1f0] sm:$0xff]
  %v80 = vld [vmem:[%s2 + $0x1f8] sm:$0xff]
  %v81 = vld [vmem:[%s2 + $0x200] sm:$0xff]
  %v82 = vld [vmem:[%s2 + $0x208] sm:$0xff]
  %v83 = vld [vmem:[%s2 + $0x210] sm:$0xff]
  %v84 = vld [vmem:[%s2 + $0x218] sm:$0xff]
  %v85 = vld [vmem:[%s2 + $0x220] sm:$0xff]
  %v86 = vld [vmem:[%s2 + $0x228] sm:$0xff]
  %v87 = vld [vmem:[%s2 + $0x230] sm:$0xff]
  %v88 = vld [vmem:[%s2 + $0x238] sm:$0xff]
  %v89 = vld [vmem:[%s2 + $0x240] sm:$0xff]
  %v90 = vld [vmem:[%s2 + $0x248] sm:$0xff]
  %v91 = vld [vmem:[%s2 + $0x250] sm:$0xff]
  %v92 = vld [vmem:[%s2 + $0x258] sm:$0xff]
  %v93 = vld [vmem:[%s2 + $0x260] sm:$0xff]
  %v94 = vld [vmem:[%s2 + $0x268] sm:$0xff]
  %v95 = vld [vmem:[%s2 + $0x270] sm:$0xff]
  %v96 = vld [vmem:[%s2 + $0x278] sm:$0xff]
  %v97 = vld [vmem:[%s2 + $0x280] sm:$0xff]
  %v98 = vld [vmem:[%s2 + $0x288] sm:$0xff]
  %v99 = vld [vmem:[%s2 + $0x290] sm:$0xff]
  %v100 = vld [vmem:[%s2 + $0x298] sm:$0xff]
  %v101 = vld [vmem:[%s2 + $0x2a0] sm:$0xff]
  %v102 = vld [vmem:[%s2 + $0x2a8] sm:$0xff]
  %v103 = vld [vmem:[%s2 + $0x2b0] sm:$0xff]
  %v104 = vld [vmem:[%s2 + $0x2b8] sm:$0xff]
  %v105 = vld [vmem:[%s2 + $0x2c0] sm:$0xff]
  %v106 = vld [vmem:[%s2 + $0x2c8] sm:$0xff]
  %v107 = vld [vmem:[%s2 + $0x2d0] sm:$0xff]
  %v108 = vld [vmem:[%s2 + $0x2d8] sm:$0xff]
  %v109 = vld [vmem:[%s2 + $0x2e0] sm:$0xff]
  %v110 = vld [vmem:[%s2 + $0x2e8] sm:$0xff]
  %v111 = vld [vmem:[%s2 + $0x2f0] sm:$0xff]
  %v112 = vld [vmem:[%s2 + $0x2f8] sm:$0xff]
  %v113 = vld [vmem:[%s3] sm:$0xff]
  %v114 = vld [vmem:[%s3 + $0x8] sm:$0xff]
  %v115 = vld [vmem:[%s3 + $0x10] sm:$0xff]
  %v116 = vld [vmem:[%s3 + $0x18] sm:$0xff]
  %v117 = vld [vmem:[%s3 + $0x20] sm:$0xff]
  %v118 = vld [vmem:[%s3 + $0x28] sm:$0xff]
  %v119 = vld [vmem:[%s3 + $0x30] sm:$0xff]
  %v120 = vld [vmem:[%s3 + $0x38] sm:$0xff]
  %v121 = vld [vmem:[%s3 + $0x40] sm:$0xff]
  %v122 = vld [vmem:[%s3 + $0x48] sm:$0xff]
  %v123 = vld [vmem:[%s3 + $0x50] sm:$0xff]
  %v124 = vld [vmem:[%s3 + $0x58] sm:$0xff]
  %v125 = vld [vmem:[%s3 + $0x60] sm:$0xff]
  %v126 = vld [vmem:[%s3 + $0x68] sm:$0xff]
  %v127 = vld [vmem:[%s3 + $0x70] sm:$0xff]
  %v128 = vld [vmem:[%s3 + $0x78] sm:$0xff]
  %v129 = vld [vmem:[%s3 + $0x80] sm:$0xff]
  %v130 = vld [vmem:[%s3 + $0x88] sm:$0xff]
  %v131 = vld [vmem:[%s3 + $0x90] sm:$0xff]
  %v132 = vld [vmem:[%s3 + $0x98] sm:$0xff]
  %v133 = vld [vmem:[%s3 + $0xa0] sm:$0xff]
  %v134 = vld [vmem:[%s3 + $0xa8] sm:$0xff]
  %v135 = vld [vmem:[%s3 + $0xb0] sm:$0xff]
  %v136 = vld [vmem:[%s3 + $0xb8] sm:$0xff]
  %v137 = vld [vmem:[%s3 + $0xc0] sm:$0xff]
  %v138 = vld [vmem:[%s3 + $0xc8] sm:$0xff]
  %v139 = vld [vmem:[%s3 + $0xd0] sm:$0xff]
  %v140 = vld [vmem:[%s3 + $0xd8] sm:$0xff]
  %v141 = vld [vmem:[%s3 + $0xe0] sm:$0xff]
  %v142 = vld [vmem:[%s3 + $0xe8] sm:$0xff]
  %v143 = vld [vmem:[%s3 + $0xf0] sm:$0xff]
  %v144 = vld [vmem:[%s3 + $0xf8] sm:$0xff]
  %146 = vset.pattern.permute.xlu0 0
  %147 = vperm.xlu0 %146, %v113
  %v148 = vpop.permute.xlu0 %147
  %151 = vset.pattern.permute.xlu0 0
  %152 = vperm.xlu0 %151, %v114
  %v153 = vpop.permute.xlu0 %152
  %156 = vset.pattern.permute.xlu0 0
  %157 = vperm.xlu0 %156, %v115
  %v158 = vpop.permute.xlu0 %157
  %161 = vset.pattern.permute.xlu0 0
  %162 = vperm.xlu0 %161, %v116
  %v163 = vpop.permute.xlu0 %162
  %166 = vset.pattern.permute.xlu0 0
  %167 = vperm.xlu0 %166, %v117
  %v168 = vpop.permute.xlu0 %167
  %171 = vset.pattern.permute.xlu0 0
  %172 = vperm.xlu0 %171, %v118
  %v173 = vpop.permute.xlu0 %172
  %176 = vset.pattern.permute.xlu0 0
  %177 = vperm.xlu0 %176, %v119
  %v178 = vpop.permute.xlu0 %177
  %181 = vset.pattern.permute.xlu0 0
  %182 = vperm.xlu0 %181, %v120
  %v183 = vpop.permute.xlu0 %182
  %186 = vset.pattern.permute.xlu0 0
  %187 = vperm.xlu0 %186, %v121
  %v188 = vpop.permute.xlu0 %187
  %191 = vset.pattern.permute.xlu0 0
  %192 = vperm.xlu0 %191, %v122
  %v193 = vpop.permute.xlu0 %192
  %196 = vset.pattern.permute.xlu0 0
  %197 = vperm.xlu0 %196, %v123
  %v198 = vpop.permute.xlu0 %197
  %201 = vset.pattern.permute.xlu0 0
  %202 = vperm.xlu0 %201, %v124
  %v203 = vpop.permute.xlu0 %202
  %206 = vset.pattern.permute.xlu0 0
  %207 = vperm.xlu0 %206, %v125
  %v208 = vpop.permute.xlu0 %207
  %211 = vset.pattern.permute.xlu0 0
  %212 = vperm.xlu0 %211, %v126
  %v213 = vpop.permute.xlu0 %212
  %216 = vset.pattern.permute.xlu0 0
  %217 = vperm.xlu0 %216, %v127
  %v218 = vpop.permute.xlu0 %217
  %221 = vset.pattern.permute.xlu0 0
  %222 = vperm.xlu0 %221, %v128
  %v223 = vpop.permute.xlu0 %222
  %226 = vset.pattern.permute.xlu0 0
  %227 = vperm.xlu0 %226, %v129
  %v228 = vpop.permute.xlu0 %227
  %231 = vset.pattern.permute.xlu0 0
  %232 = vperm.xlu0 %231, %v130
  %v233 = vpop.permute.xlu0 %232
  %236 = vset.pattern.permute.xlu0 0
  %237 = vperm.xlu0 %236, %v131
  %v238 = vpop.permute.xlu0 %237
  %241 = vset.pattern.permute.xlu0 0
  %242 = vperm.xlu0 %241, %v132
  %v243 = vpop.permute.xlu0 %242
  %246 = vset.pattern.permute.xlu0 0
  %247 = vperm.xlu0 %246, %v133
  %v248 = vpop.permute.xlu0 %247
  %251 = vset.pattern.permute.xlu0 0
  %252 = vperm.xlu0 %251, %v134
  %v253 = vpop.permute.xlu0 %252
  %256 = vset.pattern.permute.xlu0 0
  %257 = vperm.xlu0 %256, %v135
  %v258 = vpop.permute.xlu0 %257
  %261 = vset.pattern.permute.xlu0 0
  %262 = vperm.xlu0 %261, %v136
  %v263 = vpop.permute.xlu0 %262
  %266 = vset.pattern.permute.xlu0 0
  %267 = vperm.xlu0 %266, %v137
  %v268 = vpop.permute.xlu0 %267
  %271 = vset.pattern.permute.xlu0 0
  %272 = vperm.xlu0 %271, %v138
  %v273 = vpop.permute.xlu0 %272
  %276 = vset.pattern.permute.xlu0 0
  %277 = vperm.xlu0 %276, %v139
  %v278 = vpop.permute.xlu0 %277
  %281 = vset.pattern.permute.xlu0 0
  %282 = vperm.xlu0 %281, %v140
  %v283 = vpop.permute.xlu0 %282
  %286 = vset.pattern.permute.xlu0 0
  %287 = vperm.xlu0 %286, %v141
  %v288 = vpop.permute.xlu0 %287
  %291 = vset.pattern.permute.xlu0 0
  %292 = vperm.xlu0 %291, %v142
  %v293 = vpop.permute.xlu0 %292
  %296 = vset.pattern.permute.xlu0 0
  %297 = vperm.xlu0 %296, %v143
  %v298 = vpop.permute.xlu0 %297
  %301 = vset.pattern.permute.xlu0 0
  %302 = vperm.xlu0 %301, %v144
  %v303 = vpop.permute.xlu0 %302
  %v305 = vmul.f32 %v17, %v148
  %v306 = vmul.f32 %v18, %v148
  %v307 = vmul.f32 %v19, %v148
  %v308 = vmul.f32 %v20, %v153
  %v309 = vmul.f32 %v21, %v153
  %v310 = vmul.f32 %v22, %v153
  %v311 = vmul.f32 %v23, %v158
  %v312 = vmul.f32 %v24, %v158
  %v313 = vmul.f32 %v25, %v158
  %v314 = vmul.f32 %v26, %v163
  %v315 = vmul.f32 %v27, %v163
  %v316 = vmul.f32 %v28, %v163
  %v317 = vmul.f32 %v29, %v168
  %v318 = vmul.f32 %v30, %v168
  %v319 = vmul.f32 %v31, %v168
  %v320 = vmul.f32 %v32, %v173
  %v321 = vmul.f32 %v33, %v173
  %v322 = vmul.f32 %v34, %v173
  %v323 = vmul.f32 %v35, %v178
  %v324 = vmul.f32 %v36, %v178
  %v325 = vmul.f32 %v37, %v178
  %v326 = vmul.f32 %v38, %v183
  %v327 = vmul.f32 %v39, %v183
  %v328 = vmul.f32 %v40, %v183
  %v329 = vmul.f32 %v41, %v188
  %v330 = vmul.f32 %v42, %v188
  %v331 = vmul.f32 %v43, %v188
  %v332 = vmul.f32 %v44, %v193
  %v333 = vmul.f32 %v45, %v193
  %v334 = vmul.f32 %v46, %v193
  %v335 = vmul.f32 %v47, %v198
  %v336 = vmul.f32 %v48, %v198
  %v337 = vmul.f32 %v49, %v198
  %v338 = vmul.f32 %v50, %v203
  %v339 = vmul.f32 %v51, %v203
  %v340 = vmul.f32 %v52, %v203
  %v341 = vmul.f32 %v53, %v208
  %v342 = vmul.f32 %v54, %v208
  %v343 = vmul.f32 %v55, %v208
  %v344 = vmul.f32 %v56, %v213
  %v345 = vmul.f32 %v57, %v213
  %v346 = vmul.f32 %v58, %v213
  %v347 = vmul.f32 %v59, %v218
  %v348 = vmul.f32 %v60, %v218
  %v349 = vmul.f32 %v61, %v218
  %v350 = vmul.f32 %v62, %v223
  %v351 = vmul.f32 %v63, %v223
  %v352 = vmul.f32 %v64, %v223
  %v353 = vmul.f32 %v65, %v228
  %v354 = vmul.f32 %v66, %v228
  %v355 = vmul.f32 %v67, %v228
  %v356 = vmul.f32 %v68, %v233
  %v357 = vmul.f32 %v69, %v233
  %v358 = vmul.f32 %v70, %v233
  %v359 = vmul.f32 %v71, %v238
  %v360 = vmul.f32 %v72, %v238
  %v361 = vmul.f32 %v73, %v238
  %v362 = vmul.f32 %v74, %v243
  %v363 = vmul.f32 %v75, %v243
  %v364 = vmul.f32 %v76, %v243
  %v365 = vmul.f32 %v77, %v248
  %v366 = vmul.f32 %v78, %v248
  %v367 = vmul.f32 %v79, %v248
  %v368 = vmul.f32 %v80, %v253
  %v369 = vmul.f32 %v81, %v253
  %v370 = vmul.f32 %v82, %v253
  %v371 = vmul.f32 %v83, %v258
  %v372 = vmul.f32 %v84, %v258
  %v373 = vmul.f32 %v85, %v258
  %v374 = vmul.f32 %v86, %v263
  %v375 = vmul.f32 %v87, %v263
  %v376 = vmul.f32 %v88, %v263
  %v377 = vmul.f32 %v89, %v268
  %v378 = vmul.f32 %v90, %v268
  %v379 = vmul.f32 %v91, %v268
  %v380 = vmul.f32 %v92, %v273
  %v381 = vmul.f32 %v93, %v273
  %v382 = vmul.f32 %v94, %v273
  %v383 = vmul.f32 %v95, %v278
  %v384 = vmul.f32 %v96, %v278
  %v385 = vmul.f32 %v97, %v278
  %v386 = vmul.f32 %v98, %v283
  %v387 = vmul.f32 %v99, %v283
  %v388 = vmul.f32 %v100, %v283
  %v389 = vmul.f32 %v101, %v288
  %v390 = vmul.f32 %v102, %v288
  %v391 = vmul.f32 %v103, %v288
  %v392 = vmul.f32 %v104, %v293
  %v393 = vmul.f32 %v105, %v293
  %v394 = vmul.f32 %v106, %v293
  %v395 = vmul.f32 %v107, %v298
  %v396 = vmul.f32 %v108, %v298
  %v397 = vmul.f32 %v109, %v298
  %v398 = vmul.f32 %v110, %v303
  %v399 = vmul.f32 %v111, %v303
  %v400 = vmul.f32 %v112, %v303
  %v401 = vld [vmem:[%s1] sm:$0xff]
  %v402 = vld [vmem:[%s1 + $0x8] sm:$0xff]
  %v403 = vld [vmem:[%s1 + $0x10] sm:$0xff]
  %v404 = vld [vmem:[%s1 + $0x18] sm:$0xff]
  %v405 = vld [vmem:[%s1 + $0x20] sm:$0xff]
  %v406 = vld [vmem:[%s1 + $0x28] sm:$0xff]
  %v407 = vld [vmem:[%s1 + $0x30] sm:$0xff]
  %v408 = vld [vmem:[%s1 + $0x38] sm:$0xff]
  %v409 = vld [vmem:[%s1 + $0x40] sm:$0xff]
  %v410 = vld [vmem:[%s1 + $0x48] sm:$0xff]
  %v411 = vld [vmem:[%s1 + $0x50] sm:$0xff]
  %v412 = vld [vmem:[%s1 + $0x58] sm:$0xff]
  %v413 = vld [vmem:[%s1 + $0x60] sm:$0xff]
  %v414 = vld [vmem:[%s1 + $0x68] sm:$0xff]
  %v415 = vld [vmem:[%s1 + $0x70] sm:$0xff]
  %v416 = vld [vmem:[%s1 + $0x78] sm:$0xff]
  %v417 = vld [vmem:[%s1 + $0x80] sm:$0xff]
  %v418 = vld [vmem:[%s1 + $0x88] sm:$0xff]
  %v419 = vld [vmem:[%s1 + $0x90] sm:$0xff]
  %v420 = vld [vmem:[%s1 + $0x98] sm:$0xff]
  %v421 = vld [vmem:[%s1 + $0xa0] sm:$0xff]
  %v422 = vld [vmem:[%s1 + $0xa8] sm:$0xff]
  %v423 = vld [vmem:[%s1 + $0xb0] sm:$0xff]
  %v424 = vld [vmem:[%s1 + $0xb8] sm:$0xff]
  %v425 = vld [vmem:[%s1 + $0xc0] sm:$0xff]
  %v426 = vld [vmem:[%s1 + $0xc8] sm:$0xff]
  %v427 = vld [vmem:[%s1 + $0xd0] sm:$0xff]
  %v428 = vld [vmem:[%s1 + $0xd8] sm:$0xff]
  %v429 = vld [vmem:[%s1 + $0xe0] sm:$0xff]
  %v430 = vld [vmem:[%s1 + $0xe8] sm:$0xff]
  %v431 = vld [vmem:[%s1 + $0xf0] sm:$0xff]
  %v432 = vld [vmem:[%s1 + $0xf8] sm:$0xff]
  %v433 = vld [vmem:[%s1 + $0x100] sm:$0xff]
  %v434 = vld [vmem:[%s1 + $0x108] sm:$0xff]
  %v435 = vld [vmem:[%s1 + $0x110] sm:$0xff]
  %v436 = vld [vmem:[%s1 + $0x118] sm:$0xff]
  %v437 = vld [vmem:[%s1 + $0x120] sm:$0xff]
  %v438 = vld [vmem:[%s1 + $0x128] sm:$0xff]
  %v439 = vld [vmem:[%s1 + $0x130] sm:$0xff]
  %v440 = vld [vmem:[%s1 + $0x138] sm:$0xff]
  %v441 = vld [vmem:[%s1 + $0x140] sm:$0xff]
  %v442 = vld [vmem:[%s1 + $0x148] sm:$0xff]
  %v443 = vld [vmem:[%s1 + $0x150] sm:$0xff]
  %v444 = vld [vmem:[%s1 + $0x158] sm:$0xff]
  %v445 = vld [vmem:[%s1 + $0x160] sm:$0xff]
  %v446 = vld [vmem:[%s1 + $0x168] sm:$0xff]
  %v447 = vld [vmem:[%s1 + $0x170] sm:$0xff]
  %v448 = vld [vmem:[%s1 + $0x178] sm:$0xff]
  %v449 = vld [vmem:[%s1 + $0x180] sm:$0xff]
  %v450 = vld [vmem:[%s1 + $0x188] sm:$0xff]
  %v451 = vld [vmem:[%s1 + $0x190] sm:$0xff]
  %v452 = vld [vmem:[%s1 + $0x198] sm:$0xff]
  %v453 = vld [vmem:[%s1 + $0x1a0] sm:$0xff]
  %v454 = vld [vmem:[%s1 + $0x1a8] sm:$0xff]
  %v455 = vld [vmem:[%s1 + $0x1b0] sm:$0xff]
  %v456 = vld [vmem:[%s1 + $0x1b8] sm:$0xff]
  %v457 = vld [vmem:[%s1 + $0x1c0] sm:$0xff]
  %v458 = vld [vmem:[%s1 + $0x1c8] sm:$0xff]
  %v459 = vld [vmem:[%s1 + $0x1d0] sm:$0xff]
  %v460 = vld [vmem:[%s1 + $0x1d8] sm:$0xff]
  %v461 = vld [vmem:[%s1 + $0x1e0] sm:$0xff]
  %v462 = vld [vmem:[%s1 + $0x1e8] sm:$0xff]
  %v463 = vld [vmem:[%s1 + $0x1f0] sm:$0xff]
  %v464 = vld [vmem:[%s1 + $0x1f8] sm:$0xff]
  %v465 = vld [vmem:[%s1 + $0x200] sm:$0xff]
  %v466 = vld [vmem:[%s1 + $0x208] sm:$0xff]
  %v467 = vld [vmem:[%s1 + $0x210] sm:$0xff]
  %v468 = vld [vmem:[%s1 + $0x218] sm:$0xff]
  %v469 = vld [vmem:[%s1 + $0x220] sm:$0xff]
  %v470 = vld [vmem:[%s1 + $0x228] sm:$0xff]
  %v471 = vld [vmem:[%s1 + $0x230] sm:$0xff]
  %v472 = vld [vmem:[%s1 + $0x238] sm:$0xff]
  %v473 = vld [vmem:[%s1 + $0x240] sm:$0xff]
  %v474 = vld [vmem:[%s1 + $0x248] sm:$0xff]
  %v475 = vld [vmem:[%s1 + $0x250] sm:$0xff]
  %v476 = vld [vmem:[%s1 + $0x258] sm:$0xff]
  %v477 = vld [vmem:[%s1 + $0x260] sm:$0xff]
  %v478 = vld [vmem:[%s1 + $0x268] sm:$0xff]
  %v479 = vld [vmem:[%s1 + $0x270] sm:$0xff]
  %v480 = vld [vmem:[%s1 + $0x278] sm:$0xff]
  %v481 = vld [vmem:[%s1 + $0x280] sm:$0xff]
  %v482 = vld [vmem:[%s1 + $0x288] sm:$0xff]
  %v483 = vld [vmem:[%s1 + $0x290] sm:$0xff]
  %v484 = vld [vmem:[%s1 + $0x298] sm:$0xff]
  %v485 = vld [vmem:[%s1 + $0x2a0] sm:$0xff]
  %v486 = vld [vmem:[%s1 + $0x2a8] sm:$0xff]
  %v487 = vld [vmem:[%s1 + $0x2b0] sm:$0xff]
  %v488 = vld [vmem:[%s1 + $0x2b8] sm:$0xff]
  %v489 = vld [vmem:[%s1 + $0x2c0] sm:$0xff]
  %v490 = vld [vmem:[%s1 + $0x2c8] sm:$0xff]
  %v491 = vld [vmem:[%s1 + $0x2d0] sm:$0xff]
  %v492 = vld [vmem:[%s1 + $0x2d8] sm:$0xff]
  %v493 = vld [vmem:[%s1 + $0x2e0] sm:$0xff]
  %v494 = vld [vmem:[%s1 + $0x2e8] sm:$0xff]
  %v495 = vld [vmem:[%s1 + $0x2f0] sm:$0xff]
  %v496 = vld [vmem:[%s1 + $0x2f8] sm:$0xff]
  %497 = vset.pattern.permute.xlu0 1
  %498 = vperm.xlu0 %497, %v113
  %v499 = vpop.permute.xlu0 %498
  %501 = vset.pattern.permute.xlu0 1
  %502 = vperm.xlu0 %501, %v114
  %v503 = vpop.permute.xlu0 %502
  %505 = vset.pattern.permute.xlu0 1
  %506 = vperm.xlu0 %505, %v115
  %v507 = vpop.permute.xlu0 %506
  %509 = vset.pattern.permute.xlu0 1
  %510 = vperm.xlu0 %509, %v116
  %v511 = vpop.permute.xlu0 %510
  %513 = vset.pattern.permute.xlu0 1
  %514 = vperm.xlu0 %513, %v117
  %v515 = vpop.permute.xlu0 %514
  %517 = vset.pattern.permute.xlu0 1
  %518 = vperm.xlu0 %517, %v118
  %v519 = vpop.permute.xlu0 %518
  %521 = vset.pattern.permute.xlu0 1
  %522 = vperm.xlu0 %521, %v119
  %v523 = vpop.permute.xlu0 %522
  %525 = vset.pattern.permute.xlu0 1
  %526 = vperm.xlu0 %525, %v120
  %v527 = vpop.permute.xlu0 %526
  %529 = vset.pattern.permute.xlu0 1
  %530 = vperm.xlu0 %529, %v121
  %v531 = vpop.permute.xlu0 %530
  %533 = vset.pattern.permute.xlu0 1
  %534 = vperm.xlu0 %533, %v122
  %v535 = vpop.permute.xlu0 %534
  %537 = vset.pattern.permute.xlu0 1
  %538 = vperm.xlu0 %537, %v123
  %v539 = vpop.permute.xlu0 %538
  %541 = vset.pattern.permute.xlu0 1
  %542 = vperm.xlu0 %541, %v124
  %v543 = vpop.permute.xlu0 %542
  %545 = vset.pattern.permute.xlu0 1
  %546 = vperm.xlu0 %545, %v125
  %v547 = vpop.permute.xlu0 %546
  %549 = vset.pattern.permute.xlu0 1
  %550 = vperm.xlu0 %549, %v126
  %v551 = vpop.permute.xlu0 %550
  %553 = vset.pattern.permute.xlu0 1
  %554 = vperm.xlu0 %553, %v127
  %v555 = vpop.permute.xlu0 %554
  %557 = vset.pattern.permute.xlu0 1
  %558 = vperm.xlu0 %557, %v128
  %v559 = vpop.permute.xlu0 %558
  %561 = vset.pattern.permute.xlu0 1
  %562 = vperm.xlu0 %561, %v129
  %v563 = vpop.permute.xlu0 %562
  %565 = vset.pattern.permute.xlu0 1
  %566 = vperm.xlu0 %565, %v130
  %v567 = vpop.permute.xlu0 %566
  %569 = vset.pattern.permute.xlu0 1
  %570 = vperm.xlu0 %569, %v131
  %v571 = vpop.permute.xlu0 %570
  %573 = vset.pattern.permute.xlu0 1
  %574 = vperm.xlu0 %573, %v132
  %v575 = vpop.permute.xlu0 %574
  %577 = vset.pattern.permute.xlu0 1
  %578 = vperm.xlu0 %577, %v133
  %v579 = vpop.permute.xlu0 %578
  %581 = vset.pattern.permute.xlu0 1
  %582 = vperm.xlu0 %581, %v134
  %v583 = vpop.permute.xlu0 %582
  %585 = vset.pattern.permute.xlu0 1
  %586 = vperm.xlu0 %585, %v135
  %v587 = vpop.permute.xlu0 %586
  %589 = vset.pattern.permute.xlu0 1
  %590 = vperm.xlu0 %589, %v136
  %v591 = vpop.permute.xlu0 %590
  %593 = vset.pattern.permute.xlu0 1
  %594 = vperm.xlu0 %593, %v137
  %v595 = vpop.permute.xlu0 %594
  %597 = vset.pattern.permute.xlu0 1
  %598 = vperm.xlu0 %597, %v138
  %v599 = vpop.permute.xlu0 %598
  %601 = vset.pattern.permute.xlu0 1
  %602 = vperm.xlu0 %601, %v139
  %v603 = vpop.permute.xlu0 %602
  %605 = vset.pattern.permute.xlu0 1
  %606 = vperm.xlu0 %605, %v140
  %v607 = vpop.permute.xlu0 %606
  %609 = vset.pattern.permute.xlu0 1
  %610 = vperm.xlu0 %609, %v141
  %v611 = vpop.permute.xlu0 %610
  %613 = vset.pattern.permute.xlu0 1
  %614 = vperm.xlu0 %613, %v142
  %v615 = vpop.permute.xlu0 %614
  %617 = vset.pattern.permute.xlu0 1
  %618 = vperm.xlu0 %617, %v143
  %v619 = vpop.permute.xlu0 %618
  %621 = vset.pattern.permute.xlu0 1
  %622 = vperm.xlu0 %621, %v144
  %v623 = vpop.permute.xlu0 %622
  %v625 = vmul.f32 %v17, %v499
  %v626 = vmul.f32 %v18, %v499
  %v627 = vmul.f32 %v19, %v499
  %v628 = vmul.f32 %v20, %v503
  %v629 = vmul.f32 %v21, %v503
  %v630 = vmul.f32 %v22, %v503
  %v631 = vmul.f32 %v23, %v507
  %v632 = vmul.f32 %v24, %v507
  %v633 = vmul.f32 %v25, %v507
  %v634 = vmul.f32 %v26, %v511
  %v635 = vmul.f32 %v27, %v511
  %v636 = vmul.f32 %v28, %v511
  %v637 = vmul.f32 %v29, %v515
  %v638 = vmul.f32 %v30, %v515
  %v639 = vmul.f32 %v31, %v515
  %v640 = vmul.f32 %v32, %v519
  %v641 = vmul.f32 %v33, %v519
  %v642 = vmul.f32 %v34, %v519
  %v643 = vmul.f32 %v35, %v523
  %v644 = vmul.f32 %v36, %v523
  %v645 = vmul.f32 %v37, %v523
  %v646 = vmul.f32 %v38, %v527
  %v647 = vmul.f32 %v39, %v527
  %v648 = vmul.f32 %v40, %v527
  %v649 = vmul.f32 %v41, %v531
  %v650 = vmul.f32 %v42, %v531
  %v651 = vmul.f32 %v43, %v531
  %v652 = vmul.f32 %v44, %v535
  %v653 = vmul.f32 %v45, %v535
  %v654 = vmul.f32 %v46, %v535
  %v655 = vmul.f32 %v47, %v539
  %v656 = vmul.f32 %v48, %v539
  %v657 = vmul.f32 %v49, %v539
  %v658 = vmul.f32 %v50, %v543
  %v659 = vmul.f32 %v51, %v543
  %v660 = vmul.f32 %v52, %v543
  %v661 = vmul.f32 %v53, %v547
  %v662 = vmul.f32 %v54, %v547
  %v663 = vmul.f32 %v55, %v547
  %v664 = vmul.f32 %v56, %v551
  %v665 = vmul.f32 %v57, %v551
  %v666 = vmul.f32 %v58, %v551
  %v667 = vmul.f32 %v59, %v555
  %v668 = vmul.f32 %v60, %v555
  %v669 = vmul.f32 %v61, %v555
  %v670 = vmul.f32 %v62, %v559
  %v671 = vmul.f32 %v63, %v559
  %v672 = vmul.f32 %v64, %v559
  %v673 = vmul.f32 %v65, %v563
  %v674 = vmul.f32 %v66, %v563
  %v675 = vmul.f32 %v67, %v563
  %v676 = vmul.f32 %v68, %v567
  %v677 = vmul.f32 %v69, %v567
  %v678 = vmul.f32 %v70, %v567
  %v679 = vmul.f32 %v71, %v571
  %v680 = vmul.f32 %v72, %v571
  %v681 = vmul.f32 %v73, %v571
  %v682 = vmul.f32 %v74, %v575
  %v683 = vmul.f32 %v75, %v575
  %v684 = vmul.f32 %v76, %v575
  %v685 = vmul.f32 %v77, %v579
  %v686 = vmul.f32 %v78, %v579
  %v687 = vmul.f32 %v79, %v579
  %v688 = vmul.f32 %v80, %v583
  %v689 = vmul.f32 %v81, %v583
  %v690 = vmul.f32 %v82, %v583
  %v691 = vmul.f32 %v83, %v587
  %v692 = vmul.f32 %v84, %v587
  %v693 = vmul.f32 %v85, %v587
  %v694 = vmul.f32 %v86, %v591
  %v695 = vmul.f32 %v87, %v591
  %v696 = vmul.f32 %v88, %v591
  %v697 = vmul.f32 %v89, %v595
  %v698 = vmul.f32 %v90, %v595
  %v699 = vmul.f32 %v91, %v595
  %v700 = vmul.f32 %v92, %v599
  %v701 = vmul.f32 %v93, %v599
  %v702 = vmul.f32 %v94, %v599
  %v703 = vmul.f32 %v95, %v603
  %v704 = vmul.f32 %v96, %v603
  %v705 = vmul.f32 %v97, %v603
  %v706 = vmul.f32 %v98, %v607
  %v707 = vmul.f32 %v99, %v607
  %v708 = vmul.f32 %v100, %v607
  %v709 = vmul.f32 %v101, %v611
  %v710 = vmul.f32 %v102, %v611
  %v711 = vmul.f32 %v103, %v611
  %v712 = vmul.f32 %v104, %v615
  %v713 = vmul.f32 %v105, %v615
  %v714 = vmul.f32 %v106, %v615
  %v715 = vmul.f32 %v107, %v619
  %v716 = vmul.f32 %v108, %v619
  %v717 = vmul.f32 %v109, %v619
  %v718 = vmul.f32 %v110, %v623
  %v719 = vmul.f32 %v111, %v623
  %v720 = vmul.f32 %v112, %v623
  %v721 = vld [vmem:[%s0] sm:$0xff]
  %v722 = vld [vmem:[%s0 + $0x8] sm:$0xff]
  %v723 = vld [vmem:[%s0 + $0x10] sm:$0xff]
  %v724 = vld [vmem:[%s0 + $0x18] sm:$0xff]
  %v725 = vld [vmem:[%s0 + $0x20] sm:$0xff]
  %v726 = vld [vmem:[%s0 + $0x28] sm:$0xff]
  %v727 = vld [vmem:[%s0 + $0x30] sm:$0xff]
  %v728 = vld [vmem:[%s0 + $0x38] sm:$0xff]
  %v729 = vld [vmem:[%s0 + $0x40] sm:$0xff]
  %v730 = vld [vmem:[%s0 + $0x48] sm:$0xff]
  %v731 = vld [vmem:[%s0 + $0x50] sm:$0xff]
  %v732 = vld [vmem:[%s0 + $0x58] sm:$0xff]
  %v733 = vld [vmem:[%s0 + $0x60] sm:$0xff]
  %v734 = vld [vmem:[%s0 + $0x68] sm:$0xff]
  %v735 = vld [vmem:[%s0 + $0x70] sm:$0xff]
  %v736 = vld [vmem:[%s0 + $0x78] sm:$0xff]
  %v737 = vld [vmem:[%s0 + $0x80] sm:$0xff]
  %v738 = vld [vmem:[%s0 + $0x88] sm:$0xff]
  %v739 = vld [vmem:[%s0 + $0x90] sm:$0xff]
  %v740 = vld [vmem:[%s0 + $0x98] sm:$0xff]
  %v741 = vld [vmem:[%s0 + $0xa0] sm:$0xff]
  %v742 = vld [vmem:[%s0 + $0xa8] sm:$0xff]
  %v743 = vld [vmem:[%s0 + $0xb0] sm:$0xff]
  %v744 = vld [vmem:[%s0 + $0xb8] sm:$0xff]
  %v745 = vld [vmem:[%s0 + $0xc0] sm:$0xff]
  %v746 = vld [vmem:[%s0 + $0xc8] sm:$0xff]
  %v747 = vld [vmem:[%s0 + $0xd0] sm:$0xff]
  %v748 = vld [vmem:[%s0 + $0xd8] sm:$0xff]
  %v749 = vld [vmem:[%s0 + $0xe0] sm:$0xff]
  %v750 = vld [vmem:[%s0 + $0xe8] sm:$0xff]
  %v751 = vld [vmem:[%s0 + $0xf0] sm:$0xff]
  %v752 = vld [vmem:[%s0 + $0xf8] sm:$0xff]
  %v753 = vld [vmem:[%s0 + $0x100] sm:$0xff]
  %v754 = vld [vmem:[%s0 + $0x108] sm:$0xff]
  %v755 = vld [vmem:[%s0 + $0x110] sm:$0xff]
  %v756 = vld [vmem:[%s0 + $0x118] sm:$0xff]
  %v757 = vld [vmem:[%s0 + $0x120] sm:$0xff]
  %v758 = vld [vmem:[%s0 + $0x128] sm:$0xff]
  %v759 = vld [vmem:[%s0 + $0x130] sm:$0xff]
  %v760 = vld [vmem:[%s0 + $0x138] sm:$0xff]
  %v761 = vld [vmem:[%s0 + $0x140] sm:$0xff]
  %v762 = vld [vmem:[%s0 + $0x148] sm:$0xff]
  %v763 = vld [vmem:[%s0 + $0x150] sm:$0xff]
  %v764 = vld [vmem:[%s0 + $0x158] sm:$0xff]
  %v765 = vld [vmem:[%s0 + $0x160] sm:$0xff]
  %v766 = vld [vmem:[%s0 + $0x168] sm:$0xff]
  %v767 = vld [vmem:[%s0 + $0x170] sm:$0xff]
  %v768 = vld [vmem:[%s0 + $0x178] sm:$0xff]
  %v769 = vld [vmem:[%s0 + $0x180] sm:$0xff]
  %v770 = vld [vmem:[%s0 + $0x188] sm:$0xff]
  %v771 = vld [vmem:[%s0 + $0x190] sm:$0xff]
  %v772 = vld [vmem:[%s0 + $0x198] sm:$0xff]
  %v773 = vld [vmem:[%s0 + $0x1a0] sm:$0xff]
  %v774 = vld [vmem:[%s0 + $0x1a8] sm:$0xff]
  %v775 = vld [vmem:[%s0 + $0x1b0] sm:$0xff]
  %v776 = vld [vmem:[%s0 + $0x1b8] sm:$0xff]
  %v777 = vld [vmem:[%s0 + $0x1c0] sm:$0xff]
  %v778 = vld [vmem:[%s0 + $0x1c8] sm:$0xff]
  %v779 = vld [vmem:[%s0 + $0x1d0] sm:$0xff]
  %v780 = vld [vmem:[%s0 + $0x1d8] sm:$0xff]
  %v781 = vld [vmem:[%s0 + $0x1e0] sm:$0xff]
  %v782 = vld [vmem:[%s0 + $0x1e8] sm:$0xff]
  %v783 = vld [vmem:[%s0 + $0x1f0] sm:$0xff]
  %v784 = vld [vmem:[%s0 + $0x1f8] sm:$0xff]
  %v785 = vld [vmem:[%s0 + $0x200] sm:$0xff]
  %v786 = vld [vmem:[%s0 + $0x208] sm:$0xff]
  %v787 = vld [vmem:[%s0 + $0x210] sm:$0xff]
  %v788 = vld [vmem:[%s0 + $0x218] sm:$0xff]
  %v789 = vld [vmem:[%s0 + $0x220] sm:$0xff]
  %v790 = vld [vmem:[%s0 + $0x228] sm:$0xff]
  %v791 = vld [vmem:[%s0 + $0x230] sm:$0xff]
  %v792 = vld [vmem:[%s0 + $0x238] sm:$0xff]
  %v793 = vld [vmem:[%s0 + $0x240] sm:$0xff]
  %v794 = vld [vmem:[%s0 + $0x248] sm:$0xff]
  %v795 = vld [vmem:[%s0 + $0x250] sm:$0xff]
  %v796 = vld [vmem:[%s0 + $0x258] sm:$0xff]
  %v797 = vld [vmem:[%s0 + $0x260] sm:$0xff]
  %v798 = vld [vmem:[%s0 + $0x268] sm:$0xff]
  %v799 = vld [vmem:[%s0 + $0x270] sm:$0xff]
  %v800 = vld [vmem:[%s0 + $0x278] sm:$0xff]
  %v801 = vld [vmem:[%s0 + $0x280] sm:$0xff]
  %v802 = vld [vmem:[%s0 + $0x288] sm:$0xff]
  %v803 = vld [vmem:[%s0 + $0x290] sm:$0xff]
  %v804 = vld [vmem:[%s0 + $0x298] sm:$0xff]
  %v805 = vld [vmem:[%s0 + $0x2a0] sm:$0xff]
  %v806 = vld [vmem:[%s0 + $0x2a8] sm:$0xff]
  %v807 = vld [vmem:[%s0 + $0x2b0] sm:$0xff]
  %v808 = vld [vmem:[%s0 + $0x2b8] sm:$0xff]
  %v809 = vld [vmem:[%s0 + $0x2c0] sm:$0xff]
  %v810 = vld [vmem:[%s0 + $0x2c8] sm:$0xff]
  %v811 = vld [vmem:[%s0 + $0x2d0] sm:$0xff]
  %v812 = vld [vmem:[%s0 + $0x2d8] sm:$0xff]
  %v813 = vld [vmem:[%s0 + $0x2e0] sm:$0xff]
  %v814 = vld [vmem:[%s0 + $0x2e8] sm:$0xff]
  %v815 = vld [vmem:[%s0 + $0x2f0] sm:$0xff]
  %v816 = vld [vmem:[%s0 + $0x2f8] sm:$0xff]
  %817 = vmatprep.subr.mxu0 %v722
  %818 = vmatpush1.msra.mxu0 %v721
  %819 = vmatprep.subr.mxu0 %v724
  %820 = vmatpush1.msra.mxu0 %v723
  %821 = vmatprep.subr.mxu0 %v726
  %822 = vmatpush1.msra.mxu0 %v725
  %823 = vmatprep.subr.mxu0 %v728
  %824 = vmatpush1.msra.mxu0 %v727
  %825 = vmatprep.subr.mxu0 %v730
  %826 = vmatpush1.msra.mxu0 %v729
  %827 = vmatprep.subr.mxu0 %v732
  %828 = vmatpush1.msra.mxu0 %v731
  %829 = vmatprep.subr.mxu0 %v734
  %830 = vmatpush1.msra.mxu0 %v733
  %831 = vmatprep.subr.mxu0 %v736
  %832 = vmatpush1.msra.mxu0 %v735
  %833 = vmatprep.subr.mxu0 %v738
  %834 = vmatpush1.msra.mxu0 %v737
  %835 = vmatprep.subr.mxu0 %v740
  %836 = vmatpush1.msra.mxu0 %v739
  %837 = vmatprep.subr.mxu0 %v742
  %838 = vmatpush1.msra.mxu0 %v741
  %839 = vmatprep.subr.mxu0 %v744
  %840 = vmatpush1.msra.mxu0 %v743
  %841 = vmatprep.subr.mxu0 %v746
  %842 = vmatpush1.msra.mxu0 %v745
  %843 = vmatprep.subr.mxu0 %v748
  %844 = vmatpush1.msra.mxu0 %v747
  %845 = vmatprep.subr.mxu0 %v750
  %846 = vmatpush1.msra.mxu0 %v749
  %847 = vmatprep.subr.mxu0 %v752
  %848 = vmatpush1.msra.mxu0 %v751
  %849 = vmatprep.subr.mxu0 %v754
  %850 = vmatpush1.msra.mxu0 %v753
  %851 = vmatprep.subr.mxu0 %v756
  %852 = vmatpush1.msra.mxu0 %v755
  %853 = vmatprep.subr.mxu0 %v758
  %854 = vmatpush1.msra.mxu0 %v757
  %855 = vmatprep.subr.mxu0 %v760
  %856 = vmatpush1.msra.mxu0 %v759
  %857 = vmatprep.subr.mxu0 %v762
  %858 = vmatpush1.msra.mxu0 %v761
  %859 = vmatprep.subr.mxu0 %v764
  %860 = vmatpush1.msra.mxu0 %v763
  %861 = vmatprep.subr.mxu0 %v766
  %862 = vmatpush1.msra.mxu0 %v765
  %863 = vmatprep.subr.mxu0 %v768
  %864 = vmatpush1.msra.mxu0 %v767
  %865 = vmatprep.subr.mxu0 %v770
  %866 = vmatpush1.msra.mxu0 %v769
  %867 = vmatprep.subr.mxu0 %v772
  %868 = vmatpush1.msra.mxu0 %v771
  %869 = vmatprep.subr.mxu0 %v774
  %870 = vmatpush1.msra.mxu0 %v773
  %871 = vmatprep.subr.mxu0 %v776
  %872 = vmatpush1.msra.mxu0 %v775
  %873 = vmatprep.subr.mxu0 %v778
  %874 = vmatpush1.msra.mxu0 %v777
  %875 = vmatprep.subr.mxu0 %v780
  %876 = vmatpush1.msra.mxu0 %v779
  %877 = vmatprep.subr.mxu0 %v782
  %878 = vmatpush1.msra.mxu0 %v781
  %879 = vmatprep.subr.mxu0 %v784
  %880 = vmatpush1.msra.mxu0 %v783
  %881 = vmatprep.mubr.f32.mxu0 %v626
  %882 = vmatmul.mubr.f32.gmra.mrb[0].mxu0 %v625
  %v883 = vpop.f32.mrb[0].mxu0
  %v884 = vadd.f32 0.0, %v883
  %v885 = vpop.f32.mrb[0].mxu0
  %v886 = vadd.f32 0.0, %v885
  %887 = vmatprep.mubr.f32.mxu0 %v629
  %888 = vmatmul.mubr.f32.gmra.mrb[0].mxu0 %v628
  %v889 = vpop.f32.mrb[0].mxu0
  %v890 = vadd.f32 0.0, %v889
  %v891 = vpop.f32.mrb[0].mxu0
  %v892 = vadd.f32 0.0, %v891
  %893 = vmatprep.mubr.f32.mxu0 %v632
  %894 = vmatmul.mubr.f32.gmra.mrb[0].mxu0 %v631
  %v895 = vpop.f32.mrb[0].mxu0
  %v896 = vadd.f32 0.0, %v895
  %v897 = vpop.f32.mrb[0].mxu0
  %v898 = vadd.f32 0.0, %v897
  %899 = vmatprep.mubr.f32.mxu0 %v635
  %900 = vmatmul.mubr.f32.gmra.mrb[0].mxu0 %v634
  %v901 = vpop.f32.mrb[0].mxu0
  %v902 = vadd.f32 0.0, %v901
  %v903 = vpop.f32.mrb[0].mxu0
  %v904 = vadd.f32 0.0, %v903
  %905 = vmatprep.mubr.f32.mxu0 %v638
  %906 = vmatmul.mubr.f32.gmra.mrb[0].mxu0 %v637
  %v907 = vpop.f32.mrb[0].mxu0
  %v908 = vadd.f32 0.0, %v907
  %v909 = vpop.f32.mrb[0].mxu0
  %v910 = vadd.f32 0.0, %v909
  %911 = vmatprep.mubr.f32.mxu0 %v641
  %912 = vmatmul.mubr.f32.gmra.mrb[0].mxu0 %v640
  %v913 = vpop.f32.mrb[0].mxu0
  %v914 = vadd.f32 0.0, %v913
  %v915 = vpop.f32.mrb[0].mxu0
  %v916 = vadd.f32 0.0, %v915
  %917 = vmatprep.mubr.f32.mxu0 %v644
  %918 = vmatmul.mubr.f32.gmra.mrb[0].mxu0 %v643
  %v919 = vpop.f32.mrb[0].mxu0
  %v920 = vadd.f32 0.0, %v919
  %v921 = vpop.f32.mrb[0].mxu0
  %v922 = vadd.f32 0.0, %v921
  %923 = vmatprep.mubr.f32.mxu0 %v647
  %924 = vmatmul.mubr.f32.gmra.mrb[0].mxu0 %v646
  %v925 = vpop.f32.mrb[0].mxu0
  %v926 = vadd.f32 0.0, %v925
  %v927 = vpop.f32.mrb[0].mxu0
  %v928 = vadd.f32 0.0, %v927
  %929 = vmatprep.mubr.f32.mxu0 %v650
  %930 = vmatmul.mubr.f32.gmra.mrb[0].mxu0 %v649
  %v931 = vpop.f32.mrb[0].mxu0
  %v932 = vadd.f32 0.0, %v931
  %v933 = vpop.f32.mrb[0].mxu0
  %v934 = vadd.f32 0.0, %v933
  %935 = vmatprep.mubr.f32.mxu0 %v653
  %936 = vmatmul.mubr.f32.gmra.mrb[0].mxu0 %v652
  %v937 = vpop.f32.mrb[0].mxu0
  %v938 = vadd.f32 0.0, %v937
  %v939 = vpop.f32.mrb[0].mxu0
  %v940 = vadd.f32 0.0, %v939
  %941 = vmatprep.mubr.f32.mxu0 %v656
  %942 = vmatmul.mubr.f32.gmra.mrb[0].mxu0 %v655
  %v943 = vpop.f32.mrb[0].mxu0
  %v944 = vadd.f32 0.0, %v943
  %v945 = vpop.f32.mrb[0].mxu0
  %v946 = vadd.f32 0.0, %v945
  %947 = vmatprep.mubr.f32.mxu0 %v659
  %948 = vmatmul.mubr.f32.gmra.mrb[0].mxu0 %v658
  %v949 = vpop.f32.mrb[0].mxu0
  %v950 = vadd.f32 0.0, %v949
  %v951 = vpop.f32.mrb[0].mxu0
  %v952 = vadd.f32 0.0, %v951
  %953 = vmatprep.mubr.f32.mxu0 %v662
  %954 = vmatmul.mubr.f32.gmra.mrb[0].mxu0 %v661
  %v955 = vpop.f32.mrb[0].mxu0
  %v956 = vadd.f32 0.0, %v955
  %v957 = vpop.f32.mrb[0].mxu0
  %v958 = vadd.f32 0.0, %v957
  %959 = vmatprep.mubr.f32.mxu0 %v665
  %960 = vmatmul.mubr.f32.gmra.mrb[0].mxu0 %v664
  %v961 = vpop.f32.mrb[0].mxu0
  %v962 = vadd.f32 0.0, %v961
  %v963 = vpop.f32.mrb[0].mxu0
  %v964 = vadd.f32 0.0, %v963
  %965 = vmatprep.mubr.f32.mxu0 %v668
  %966 = vmatmul.mubr.f32.gmra.mrb[0].mxu0 %v667
  %v967 = vpop.f32.mrb[0].mxu0
  %v968 = vadd.f32 0.0, %v967
  %v969 = vpop.f32.mrb[0].mxu0
  %v970 = vadd.f32 0.0, %v969
  %971 = vmatprep.mubr.f32.mxu0 %v671
  %972 = vmatmul.mubr.f32.gmra.mrb[0].mxu0 %v670
  %v973 = vpop.f32.mrb[0].mxu0
  %v974 = vadd.f32 0.0, %v973
  %v975 = vpop.f32.mrb[0].mxu0
  %v976 = vadd.f32 0.0, %v975
  %977 = vmatprep.mubr.f32.mxu0 %v674
  %978 = vmatmul.mubr.f32.gmra.mrb[0].mxu0 %v673
  %v979 = vpop.f32.mrb[0].mxu0
  %v980 = vadd.f32 0.0, %v979
  %v981 = vpop.f32.mrb[0].mxu0
  %v982 = vadd.f32 0.0, %v981
  %983 = vmatprep.mubr.f32.mxu0 %v677
  %984 = vmatmul.mubr.f32.gmra.mrb[0].mxu0 %v676
  %v985 = vpop.f32.mrb[0].mxu0
  %v986 = vadd.f32 0.0, %v985
  %v987 = vpop.f32.mrb[0].mxu0
  %v988 = vadd.f32 0.0, %v987
  %989 = vmatprep.mubr.f32.mxu0 %v680
  %990 = vmatmul.mubr.f32.gmra.mrb[0].mxu0 %v679
  %v991 = vpop.f32.mrb[0].mxu0
  %v992 = vadd.f32 0.0, %v991
  %v993 = vpop.f32.mrb[0].mxu0
  %v994 = vadd.f32 0.0, %v993
  %995 = vmatprep.mubr.f32.mxu0 %v683
  %996 = vmatmul.mubr.f32.gmra.mrb[0].mxu0 %v682
  %v997 = vpop.f32.mrb[0].mxu0
  %v998 = vadd.f32 0.0, %v997
  %v999 = vpop.f32.mrb[0].mxu0
  %v1000 = vadd.f32 0.0, %v999
  %1001 = vmatprep.mubr.f32.mxu0 %v686
  %1002 = vmatmul.mubr.f32.gmra.mrb[0].mxu0 %v685
  %v1003 = vpop.f32.mrb[0].mxu0
  %v1004 = vadd.f32 0.0, %v1003
  %v1005 = vpop.f32.mrb[0].mxu0
  %v1006 = vadd.f32 0.0, %v1005
  %1007 = vmatprep.mubr.f32.mxu0 %v689
  %1008 = vmatmul.mubr.f32.gmra.mrb[0].mxu0 %v688
  %v1009 = vpop.f32.mrb[0].mxu0
  %v1010 = vadd.f32 0.0, %v1009
  %v1011 = vpop.f32.mrb[0].mxu0
  %v1012 = vadd.f32 0.0, %v1011
  %1013 = vmatprep.mubr.f32.mxu0 %v692
  %1014 = vmatmul.mubr.f32.gmra.mrb[0].mxu0 %v691
  %v1015 = vpop.f32.mrb[0].mxu0
  %v1016 = vadd.f32 0.0, %v1015
  %v1017 = vpop.f32.mrb[0].mxu0
  %v1018 = vadd.f32 0.0, %v1017
  %1019 = vmatprep.mubr.f32.mxu0 %v695
  %1020 = vmatmul.mubr.f32.gmra.mrb[0].mxu0 %v694
  %v1021 = vpop.f32.mrb[0].mxu0
  %v1022 = vadd.f32 0.0, %v1021
  %v1023 = vpop.f32.mrb[0].mxu0
  %v1024 = vadd.f32 0.0, %v1023
  %1025 = vmatprep.mubr.f32.mxu0 %v698
  %1026 = vmatmul.mubr.f32.gmra.mrb[0].mxu0 %v697
  %v1027 = vpop.f32.mrb[0].mxu0
  %v1028 = vadd.f32 0.0, %v1027
  %v1029 = vpop.f32.mrb[0].mxu0
  %v1030 = vadd.f32 0.0, %v1029
  %1031 = vmatprep.mubr.f32.mxu0 %v701
  %1032 = vmatmul.mubr.f32.gmra.mrb[0].mxu0 %v700
  %v1033 = vpop.f32.mrb[0].mxu0
  %v1034 = vadd.f32 0.0, %v1033
  %v1035 = vpop.f32.mrb[0].mxu0
  %v1036 = vadd.f32 0.0, %v1035
  %1037 = vmatprep.mubr.f32.mxu0 %v704
  %1038 = vmatmul.mubr.f32.gmra.mrb[0].mxu0 %v703
  %v1039 = vpop.f32.mrb[0].mxu0
  %v1040 = vadd.f32 0.0, %v1039
  %v1041 = vpop.f32.mrb[0].mxu0
  %v1042 = vadd.f32 0.0, %v1041
  %1043 = vmatprep.mubr.f32.mxu0 %v707
  %1044 = vmatmul.mubr.f32.gmra.mrb[0].mxu0 %v706
  %v1045 = vpop.f32.mrb[0].mxu0
  %v1046 = vadd.f32 0.0, %v1045
  %v1047 = vpop.f32.mrb[0].mxu0
  %v1048 = vadd.f32 0.0, %v1047
  %1049 = vmatprep.mubr.f32.mxu0 %v710
  %1050 = vmatmul.mubr.f32.gmra.mrb[0].mxu0 %v709
  %v1051 = vpop.f32.mrb[0].mxu0
  %v1052 = vadd.f32 0.0, %v1051
  %v1053 = vpop.f32.mrb[0].mxu0
  %v1054 = vadd.f32 0.0, %v1053
  %1055 = vmatprep.mubr.f32.mxu0 %v713
  %1056 = vmatmul.mubr.f32.gmra.mrb[0].mxu0 %v712
  %v1057 = vpop.f32.mrb[0].mxu0
  %v1058 = vadd.f32 0.0, %v1057
  %v1059 = vpop.f32.mrb[0].mxu0
  %v1060 = vadd.f32 0.0, %v1059
  %1061 = vmatprep.mubr.f32.mxu0 %v716
  %1062 = vmatmul.mubr.f32.gmra.mrb[0].mxu0 %v715
  %v1063 = vpop.f32.mrb[0].mxu0
  %v1064 = vadd.f32 0.0, %v1063
  %v1065 = vpop.f32.mrb[0].mxu0
  %v1066 = vadd.f32 0.0, %v1065
  %1067 = vmatprep.mubr.f32.mxu0 %v719
  %1068 = vmatmul.mubr.f32.gmra.mrb[0].mxu0 %v718
  %v1069 = vpop.f32.mrb[0].mxu0
  %v1070 = vadd.f32 0.0, %v1069
  %v1071 = vpop.f32.mrb[0].mxu0
  %v1072 = vadd.f32 0.0, %v1071
  %1073 = vdwg.mxu0
  %1074 = vmatprep.subr.mxu0 %v786
  %1075 = vmatpush1.msra.mxu0 %v785
  %1076 = vmatprep.subr.mxu0 %v788
  %1077 = vmatpush1.msra.mxu0 %v787
  %1078 = vmatprep.subr.mxu0 %v790
  %1079 = vmatpush1.msra.mxu0 %v789
  %1080 = vmatprep.subr.mxu0 %v792
  %1081 = vmatpush1.msra.mxu0 %v791
  %1082 = vmatprep.subr.mxu0 %v794
  %1083 = vmatpush1.msra.mxu0 %v793
  %1084 = vmatprep.subr.mxu0 %v796
  %1085 = vmatpush1.msra.mxu0 %v795
  %1086 = vmatprep.subr.mxu0 %v798
  %1087 = vmatpush1.msra.mxu0 %v797
  %1088 = vmatprep.subr.mxu0 %v800
  %1089 = vmatpush1.msra.mxu0 %v799
  %1090 = vmatprep.subr.mxu0 %v802
  %1091 = vmatpush1.msra.mxu0 %v801
  %1092 = vmatprep.subr.mxu0 %v804
  %1093 = vmatpush1.msra.mxu0 %v803
  %1094 = vmatprep.subr.mxu0 %v806
  %1095 = vmatpush1.msra.mxu0 %v805
  %1096 = vmatprep.subr.mxu0 %v808
  %1097 = vmatpush1.msra.mxu0 %v807
  %1098 = vmatprep.subr.mxu0 %v810
  %1099 = vmatpush1.msra.mxu0 %v809
  %1100 = vmatprep.subr.mxu0 %v812
  %1101 = vmatpush1.msra.mxu0 %v811
  %1102 = vmatprep.subr.mxu0 %v814
  %1103 = vmatpush1.msra.mxu0 %v813
  %1104 = vmatprep.subr.mxu0 %v816
  %1105 = vmatpush1.msra.mxu0 %v815
  %1106 = vmatprep.subr.mxu0 0.0
  %1107 = vmatpush1.msra.mxu0 0.0
  %1108 = vmatprep.subr.mxu0 0.0
  %1109 = vmatpush1.msra.mxu0 0.0
  %1110 = vmatprep.subr.mxu0 0.0
  %1111 = vmatpush1.msra.mxu0 0.0
  %1112 = vmatprep.subr.mxu0 0.0
  %1113 = vmatpush1.msra.mxu0 0.0
  %1114 = vmatprep.subr.mxu0 0.0
  %1115 = vmatpush1.msra.mxu0 0.0
  %1116 = vmatprep.subr.mxu0 0.0
  %1117 = vmatpush1.msra.mxu0 0.0
  %1118 = vmatprep.subr.mxu0 0.0
  %1119 = vmatpush1.msra.mxu0 0.0
  %1120 = vmatprep.subr.mxu0 0.0
  %1121 = vmatpush1.msra.mxu0 0.0
  %1122 = vmatprep.subr.mxu0 0.0
  %1123 = vmatpush1.msra.mxu0 0.0
  %1124 = vmatprep.subr.mxu0 0.0
  %1125 = vmatpush1.msra.mxu0 0.0
  %1126 = vmatprep.subr.mxu0 0.0
  %1127 = vmatpush1.msra.mxu0 0.0
  %1128 = vmatprep.subr.mxu0 0.0
  %1129 = vmatpush1.msra.mxu0 0.0
  %1130 = vmatprep.subr.mxu0 0.0
  %1131 = vmatpush1.msra.mxu0 0.0
  %1132 = vmatprep.subr.mxu0 0.0
  %1133 = vmatpush1.msra.mxu0 0.0
  %1134 = vmatprep.subr.mxu0 0.0
  %1135 = vmatpush1.msra.mxu0 0.0
  %1136 = vmatprep.subr.mxu0 0.0
  %1137 = vmatpush1.msra.mxu0 0.0
  %1138 = vmatprep.mubr.f32.mxu0 0.0
  %1139 = vmatmul.mubr.f32.gmra.mrb[0].mxu0 %v627
  %v1140 = vpop.f32.mrb[0].mxu0
  %v1141 = vadd.f32 %v884, %v1140
  %v1142 = vpop.f32.mrb[0].mxu0
  %v1143 = vadd.f32 %v886, %v1142
  %1144 = vmatprep.mubr.f32.mxu0 0.0
  %1145 = vmatmul.mubr.f32.gmra.mrb[0].mxu0 %v630
  %v1146 = vpop.f32.mrb[0].mxu0
  %v1147 = vadd.f32 %v890, %v1146
  %v1148 = vpop.f32.mrb[0].mxu0
  %v1149 = vadd.f32 %v892, %v1148
  %1150 = vmatprep.mubr.f32.mxu0 0.0
  %1151 = vmatmul.mubr.f32.gmra.mrb[0].mxu0 %v633
  %v1152 = vpop.f32.mrb[0].mxu0
  %v1153 = vadd.f32 %v896, %v1152
  %v1154 = vpop.f32.mrb[0].mxu0
  %v1155 = vadd.f32 %v898, %v1154
  %1156 = vmatprep.mubr.f32.mxu0 0.0
  %1157 = vmatmul.mubr.f32.gmra.mrb[0].mxu0 %v636
  %v1158 = vpop.f32.mrb[0].mxu0
  %v1159 = vadd.f32 %v902, %v1158
  %v1160 = vpop.f32.mrb[0].mxu0
  %v1161 = vadd.f32 %v904, %v1160
  %1162 = vmatprep.mubr.f32.mxu0 0.0
  %1163 = vmatmul.mubr.f32.gmra.mrb[0].mxu0 %v639
  %v1164 = vpop.f32.mrb[0].mxu0
  %v1165 = vadd.f32 %v908, %v1164
  %v1166 = vpop.f32.mrb[0].mxu0
  %v1167 = vadd.f32 %v910, %v1166
  %1168 = vmatprep.mubr.f32.mxu0 0.0
  %1169 = vmatmul.mubr.f32.gmra.mrb[0].mxu0 %v642
  %v1170 = vpop.f32.mrb[0].mxu0
  %v1171 = vadd.f32 %v914, %v1170
  %v1172 = vpop.f32.mrb[0].mxu0
  %v1173 = vadd.f32 %v916, %v1172
  %1174 = vmatprep.mubr.f32.mxu0 0.0
  %1175 = vmatmul.mubr.f32.gmra.mrb[0].mxu0 %v645
  %v1176 = vpop.f32.mrb[0].mxu0
  %v1177 = vadd.f32 %v920, %v1176
  %v1178 = vpop.f32.mrb[0].mxu0
  %v1179 = vadd.f32 %v922, %v1178
  %1180 = vmatprep.mubr.f32.mxu0 0.0
  %1181 = vmatmul.mubr.f32.gmra.mrb[0].mxu0 %v648
  %v1182 = vpop.f32.mrb[0].mxu0
  %v1183 = vadd.f32 %v926, %v1182
  %v1184 = vpop.f32.mrb[0].mxu0
  %v1185 = vadd.f32 %v928, %v1184
  %1186 = vmatprep.mubr.f32.mxu0 0.0
  %1187 = vmatmul.mubr.f32.gmra.mrb[0].mxu0 %v651
  %v1188 = vpop.f32.mrb[0].mxu0
  %v1189 = vadd.f32 %v932, %v1188
  %v1190 = vpop.f32.mrb[0].mxu0
  %v1191 = vadd.f32 %v934, %v1190
  %1192 = vmatprep.mubr.f32.mxu0 0.0
  %1193 = vmatmul.mubr.f32.gmra.mrb[0].mxu0 %v654
  %v1194 = vpop.f32.mrb[0].mxu0
  %v1195 = vadd.f32 %v938, %v1194
  %v1196 = vpop.f32.mrb[0].mxu0
  %v1197 = vadd.f32 %v940, %v1196
  %1198 = vmatprep.mubr.f32.mxu0 0.0
  %1199 = vmatmul.mubr.f32.gmra.mrb[0].mxu0 %v657
  %v1200 = vpop.f32.mrb[0].mxu0
  %v1201 = vadd.f32 %v944, %v1200
  %v1202 = vpop.f32.mrb[0].mxu0
  %v1203 = vadd.f32 %v946, %v1202
  %1204 = vmatprep.mubr.f32.mxu0 0.0
  %1205 = vmatmul.mubr.f32.gmra.mrb[0].mxu0 %v660
  %v1206 = vpop.f32.mrb[0].mxu0
  %v1207 = vadd.f32 %v950, %v1206
  %v1208 = vpop.f32.mrb[0].mxu0
  %v1209 = vadd.f32 %v952, %v1208
  %1210 = vmatprep.mubr.f32.mxu0 0.0
  %1211 = vmatmul.mubr.f32.gmra.mrb[0].mxu0 %v663
  %v1212 = vpop.f32.mrb[0].mxu0
  %v1213 = vadd.f32 %v956, %v1212
  %v1214 = vpop.f32.mrb[0].mxu0
  %v1215 = vadd.f32 %v958, %v1214
  %1216 = vmatprep.mubr.f32.mxu0 0.0
  %1217 = vmatmul.mubr.f32.gmra.mrb[0].mxu0 %v666
  %v1218 = vpop.f32.mrb[0].mxu0
  %v1219 = vadd.f32 %v962, %v1218
  %v1220 = vpop.f32.mrb[0].mxu0
  %v1221 = vadd.f32 %v964, %v1220
  %1222 = vmatprep.mubr.f32.mxu0 0.0
  %1223 = vmatmul.mubr.f32.gmra.mrb[0].mxu0 %v669
  %v1224 = vpop.f32.mrb[0].mxu0
  %v1225 = vadd.f32 %v968, %v1224
  %v1226 = vpop.f32.mrb[0].mxu0
  %v1227 = vadd.f32 %v970, %v1226
  %1228 = vmatprep.mubr.f32.mxu0 0.0
  %1229 = vmatmul.mubr.f32.gmra.mrb[0].mxu0 %v672
  %v1230 = vpop.f32.mrb[0].mxu0
  %v1231 = vadd.f32 %v974, %v1230
  %v1232 = vpop.f32.mrb[0].mxu0
  %v1233 = vadd.f32 %v976, %v1232
  %1234 = vmatprep.mubr.f32.mxu0 0.0
  %1235 = vmatmul.mubr.f32.gmra.mrb[0].mxu0 %v675
  %v1236 = vpop.f32.mrb[0].mxu0
  %v1237 = vadd.f32 %v980, %v1236
  %v1238 = vpop.f32.mrb[0].mxu0
  %v1239 = vadd.f32 %v982, %v1238
  %1240 = vmatprep.mubr.f32.mxu0 0.0
  %1241 = vmatmul.mubr.f32.gmra.mrb[0].mxu0 %v678
  %v1242 = vpop.f32.mrb[0].mxu0
  %v1243 = vadd.f32 %v986, %v1242
  %v1244 = vpop.f32.mrb[0].mxu0
  %v1245 = vadd.f32 %v988, %v1244
  %1246 = vmatprep.mubr.f32.mxu0 0.0
  %1247 = vmatmul.mubr.f32.gmra.mrb[0].mxu0 %v681
  %v1248 = vpop.f32.mrb[0].mxu0
  %v1249 = vadd.f32 %v992, %v1248
  %v1250 = vpop.f32.mrb[0].mxu0
  %v1251 = vadd.f32 %v994, %v1250
  %1252 = vmatprep.mubr.f32.mxu0 0.0
  %1253 = vmatmul.mubr.f32.gmra.mrb[0].mxu0 %v684
  %v1254 = vpop.f32.mrb[0].mxu0
  %v1255 = vadd.f32 %v998, %v1254
  %v1256 = vpop.f32.mrb[0].mxu0
  %v1257 = vadd.f32 %v1000, %v1256
  %1258 = vmatprep.mubr.f32.mxu0 0.0
  %1259 = vmatmul.mubr.f32.gmra.mrb[0].mxu0 %v687
  %v1260 = vpop.f32.mrb[0].mxu0
  %v1261 = vadd.f32 %v1004, %v1260
  %v1262 = vpop.f32.mrb[0].mxu0
  %v1263 = vadd.f32 %v1006, %v1262
  %1264 = vmatprep.mubr.f32.mxu0 0.0
  %1265 = vmatmul.mubr.f32.gmra.mrb[0].mxu0 %v690
  %v1266 = vpop.f32.mrb[0].mxu0
  %v1267 = vadd.f32 %v1010, %v1266
  %v1268 = vpop.f32.mrb[0].mxu0
  %v1269 = vadd.f32 %v1012, %v1268
  %1270 = vmatprep.mubr.f32.mxu0 0.0
  %1271 = vmatmul.mubr.f32.gmra.mrb[0].mxu0 %v693
  %v1272 = vpop.f32.mrb[0].mxu0
  %v1273 = vadd.f32 %v1016, %v1272
  %v1274 = vpop.f32.mrb[0].mxu0
  %v1275 = vadd.f32 %v1018, %v1274
  %1276 = vmatprep.mubr.f32.mxu0 0.0
  %1277 = vmatmul.mubr.f32.gmra.mrb[0].mxu0 %v696
  %v1278 = vpop.f32.mrb[0].mxu0
  %v1279 = vadd.f32 %v1022, %v1278
  %v1280 = vpop.f32.mrb[0].mxu0
  %v1281 = vadd.f32 %v1024, %v1280
  %1282 = vmatprep.mubr.f32.mxu0 0.0
  %1283 = vmatmul.mubr.f32.gmra.mrb[0].mxu0 %v699
  %v1284 = vpop.f32.mrb[0].mxu0
  %v1285 = vadd.f32 %v1028, %v1284
  %v1286 = vpop.f32.mrb[0].mxu0
  %v1287 = vadd.f32 %v1030, %v1286
  %1288 = vmatprep.mubr.f32.mxu0 0.0
  %1289 = vmatmul.mubr.f32.gmra.mrb[0].mxu0 %v702
  %v1290 = vpop.f32.mrb[0].mxu0
  %v1291 = vadd.f32 %v1034, %v1290
  %v1292 = vpop.f32.mrb[0].mxu0
  %v1293 = vadd.f32 %v1036, %v1292
  %1294 = vmatprep.mubr.f32.mxu0 0.0
  %1295 = vmatmul.mubr.f32.gmra.mrb[0].mxu0 %v705
  %v1296 = vpop.f32.mrb[0].mxu0
  %v1297 = vadd.f32 %v1040, %v1296
  %v1298 = vpop.f32.mrb[0].mxu0
  %v1299 = vadd.f32 %v1042, %v1298
  %1300 = vmatprep.mubr.f32.mxu0 0.0
  %1301 = vmatmul.mubr.f32.gmra.mrb[0].mxu0 %v708
  %v1302 = vpop.f32.mrb[0].mxu0
  %v1303 = vadd.f32 %v1046, %v1302
  %v1304 = vpop.f32.mrb[0].mxu0
  %v1305 = vadd.f32 %v1048, %v1304
  %1306 = vmatprep.mubr.f32.mxu0 0.0
  %1307 = vmatmul.mubr.f32.gmra.mrb[0].mxu0 %v711
  %v1308 = vpop.f32.mrb[0].mxu0
  %v1309 = vadd.f32 %v1052, %v1308
  %v1310 = vpop.f32.mrb[0].mxu0
  %v1311 = vadd.f32 %v1054, %v1310
  %1312 = vmatprep.mubr.f32.mxu0 0.0
  %1313 = vmatmul.mubr.f32.gmra.mrb[0].mxu0 %v714
  %v1314 = vpop.f32.mrb[0].mxu0
  %v1315 = vadd.f32 %v1058, %v1314
  %v1316 = vpop.f32.mrb[0].mxu0
  %v1317 = vadd.f32 %v1060, %v1316
  %1318 = vmatprep.mubr.f32.mxu0 0.0
  %1319 = vmatmul.mubr.f32.gmra.mrb[0].mxu0 %v717
  %v1320 = vpop.f32.mrb[0].mxu0
  %v1321 = vadd.f32 %v1064, %v1320
  %v1322 = vpop.f32.mrb[0].mxu0
  %v1323 = vadd.f32 %v1066, %v1322
  %1324 = vmatprep.mubr.f32.mxu0 0.0
  %1325 = vmatmul.mubr.f32.gmra.mrb[0].mxu0 %v720
  %v1326 = vpop.f32.mrb[0].mxu0
  %v1327 = vadd.f32 %v1070, %v1326
  %v1328 = vpop.f32.mrb[0].mxu0
  %v1329 = vadd.f32 %v1072, %v1328
  %1330 = vdwg.mxu0
  %1331 = vmatprep.subr.mxu0 %v402
  %1332 = vmatpush1.msra.mxu0 %v401
  %1333 = vmatprep.subr.mxu0 %v404
  %1334 = vmatpush1.msra.mxu0 %v403
  %1335 = vmatprep.subr.mxu0 %v406
  %1336 = vmatpush1.msra.mxu0 %v405
  %1337 = vmatprep.subr.mxu0 %v408
  %1338 = vmatpush1.msra.mxu0 %v407
  %1339 = vmatprep.subr.mxu0 %v410
  %1340 = vmatpush1.msra.mxu0 %v409
  %1341 = vmatprep.subr.mxu0 %v412
  %1342 = vmatpush1.msra.mxu0 %v411
  %1343 = vmatprep.subr.mxu0 %v414
  %1344 = vmatpush1.msra.mxu0 %v413
  %1345 = vmatprep.subr.mxu0 %v416
  %1346 = vmatpush1.msra.mxu0 %v415
  %1347 = vmatprep.subr.mxu0 %v418
  %1348 = vmatpush1.msra.mxu0 %v417
  %1349 = vmatprep.subr.mxu0 %v420
  %1350 = vmatpush1.msra.mxu0 %v419
  %1351 = vmatprep.subr.mxu0 %v422
  %1352 = vmatpush1.msra.mxu0 %v421
  %1353 = vmatprep.subr.mxu0 %v424
  %1354 = vmatpush1.msra.mxu0 %v423
  %1355 = vmatprep.subr.mxu0 %v426
  %1356 = vmatpush1.msra.mxu0 %v425
  %1357 = vmatprep.subr.mxu0 %v428
  %1358 = vmatpush1.msra.mxu0 %v427
  %1359 = vmatprep.subr.mxu0 %v430
  %1360 = vmatpush1.msra.mxu0 %v429
  %1361 = vmatprep.subr.mxu0 %v432
  %1362 = vmatpush1.msra.mxu0 %v431
  %1363 = vmatprep.subr.mxu0 %v434
  %1364 = vmatpush1.msra.mxu0 %v433
  %1365 = vmatprep.subr.mxu0 %v436
  %1366 = vmatpush1.msra.mxu0 %v435
  %1367 = vmatprep.subr.mxu0 %v438
  %1368 = vmatpush1.msra.mxu0 %v437
  %1369 = vmatprep.subr.mxu0 %v440
  %1370 = vmatpush1.msra.mxu0 %v439
  %1371 = vmatprep.subr.mxu0 %v442
  %1372 = vmatpush1.msra.mxu0 %v441
  %1373 = vmatprep.subr.mxu0 %v444
  %1374 = vmatpush1.msra.mxu0 %v443
  %1375 = vmatprep.subr.mxu0 %v446
  %1376 = vmatpush1.msra.mxu0 %v445
  %1377 = vmatprep.subr.mxu0 %v448
  %1378 = vmatpush1.msra.mxu0 %v447
  %1379 = vmatprep.subr.mxu0 %v450
  %1380 = vmatpush1.msra.mxu0 %v449
  %1381 = vmatprep.subr.mxu0 %v452
  %1382 = vmatpush1.msra.mxu0 %v451
  %1383 = vmatprep.subr.mxu0 %v454
  %1384 = vmatpush1.msra.mxu0 %v453
  %1385 = vmatprep.subr.mxu0 %v456
  %1386 = vmatpush1.msra.mxu0 %v455
  %1387 = vmatprep.subr.mxu0 %v458
  %1388 = vmatpush1.msra.mxu0 %v457
  %1389 = vmatprep.subr.mxu0 %v460
  %1390 = vmatpush1.msra.mxu0 %v459
  %1391 = vmatprep.subr.mxu0 %v462
  %1392 = vmatpush1.msra.mxu0 %v461
  %1393 = vmatprep.subr.mxu0 %v464
  %1394 = vmatpush1.msra.mxu0 %v463
  %1395 = vmatprep.mubr.f32.mxu0 %v306
  %1396 = vmatmul.mubr.f32.gmra.mrb[0].mxu0 %v305
  %v1397 = vpop.f32.mrb[0].mxu0
  %v1398 = vadd.f32 %v1141, %v1397
  %v1399 = vpop.f32.mrb[0].mxu0
  %v1400 = vadd.f32 %v1143, %v1399
  %1401 = vmatprep.mubr.f32.mxu0 %v309
  %1402 = vmatmul.mubr.f32.gmra.mrb[0].mxu0 %v308
  %v1403 = vpop.f32.mrb[0].mxu0
  %v1404 = vadd.f32 %v1147, %v1403
  %v1405 = vpop.f32.mrb[0].mxu0
  %v1406 = vadd.f32 %v1149, %v1405
  %1407 = vmatprep.mubr.f32.mxu0 %v312
  %1408 = vmatmul.mubr.f32.gmra.mrb[0].mxu0 %v311
  %v1409 = vpop.f32.mrb[0].mxu0
  %v1410 = vadd.f32 %v1153, %v1409
  %v1411 = vpop.f32.mrb[0].mxu0
  %v1412 = vadd.f32 %v1155, %v1411
  %1413 = vmatprep.mubr.f32.mxu0 %v315
  %1414 = vmatmul.mubr.f32.gmra.mrb[0].mxu0 %v314
  %v1415 = vpop.f32.mrb[0].mxu0
  %v1416 = vadd.f32 %v1159, %v1415
  %v1417 = vpop.f32.mrb[0].mxu0
  %v1418 = vadd.f32 %v1161, %v1417
  %1419 = vmatprep.mubr.f32.mxu0 %v318
  %1420 = vmatmul.mubr.f32.gmra.mrb[0].mxu0 %v317
  %v1421 = vpop.f32.mrb[0].mxu0
  %v1422 = vadd.f32 %v1165, %v1421
  %v1423 = vpop.f32.mrb[0].mxu0
  %v1424 = vadd.f32 %v1167, %v1423
  %1425 = vmatprep.mubr.f32.mxu0 %v321
  %1426 = vmatmul.mubr.f32.gmra.mrb[0].mxu0 %v320
  %v1427 = vpop.f32.mrb[0].mxu0
  %v1428 = vadd.f32 %v1171, %v1427
  %v1429 = vpop.f32.mrb[0].mxu0
  %v1430 = vadd.f32 %v1173, %v1429
  %1431 = vmatprep.mubr.f32.mxu0 %v324
  %1432 = vmatmul.mubr.f32.gmra.mrb[0].mxu0 %v323
  %v1433 = vpop.f32.mrb[0].mxu0
  %v1434 = vadd.f32 %v1177, %v1433
  %v1435 = vpop.f32.mrb[0].mxu0
  %v1436 = vadd.f32 %v1179, %v1435
  %1437 = vmatprep.mubr.f32.mxu0 %v327
  %1438 = vmatmul.mubr.f32.gmra.mrb[0].mxu0 %v326
  %v1439 = vpop.f32.mrb[0].mxu0
  %v1440 = vadd.f32 %v1183, %v1439
  %v1441 = vpop.f32.mrb[0].mxu0
  %v1442 = vadd.f32 %v1185, %v1441
  %1443 = vmatprep.mubr.f32.mxu0 %v330
  %1444 = vmatmul.mubr.f32.gmra.mrb[0].mxu0 %v329
  %v1445 = vpop.f32.mrb[0].mxu0
  %v1446 = vadd.f32 %v1189, %v1445
  %v1447 = vpop.f32.mrb[0].mxu0
  %v1448 = vadd.f32 %v1191, %v1447
  %1449 = vmatprep.mubr.f32.mxu0 %v333
  %1450 = vmatmul.mubr.f32.gmra.mrb[0].mxu0 %v332
  %v1451 = vpop.f32.mrb[0].mxu0
  %v1452 = vadd.f32 %v1195, %v1451
  %v1453 = vpop.f32.mrb[0].mxu0
  %v1454 = vadd.f32 %v1197, %v1453
  %1455 = vmatprep.mubr.f32.mxu0 %v336
  %1456 = vmatmul.mubr.f32.gmra.mrb[0].mxu0 %v335
  %v1457 = vpop.f32.mrb[0].mxu0
  %v1458 = vadd.f32 %v1201, %v1457
  %v1459 = vpop.f32.mrb[0].mxu0
  %v1460 = vadd.f32 %v1203, %v1459
  %1461 = vmatprep.mubr.f32.mxu0 %v339
  %1462 = vmatmul.mubr.f32.gmra.mrb[0].mxu0 %v338
  %v1463 = vpop.f32.mrb[0].mxu0
  %v1464 = vadd.f32 %v1207, %v1463
  %v1465 = vpop.f32.mrb[0].mxu0
  %v1466 = vadd.f32 %v1209, %v1465
  %1467 = vmatprep.mubr.f32.mxu0 %v342
  %1468 = vmatmul.mubr.f32.gmra.mrb[0].mxu0 %v341
  %v1469 = vpop.f32.mrb[0].mxu0
  %v1470 = vadd.f32 %v1213, %v1469
  %v1471 = vpop.f32.mrb[0].mxu0
  %v1472 = vadd.f32 %v1215, %v1471
  %1473 = vmatprep.mubr.f32.mxu0 %v345
  %1474 = vmatmul.mubr.f32.gmra.mrb[0].mxu0 %v344
  %v1475 = vpop.f32.mrb[0].mxu0
  %v1476 = vadd.f32 %v1219, %v1475
  %v1477 = vpop.f32.mrb[0].mxu0
  %v1478 = vadd.f32 %v1221, %v1477
  %1479 = vmatprep.mubr.f32.mxu0 %v348
  %1480 = vmatmul.mubr.f32.gmra.mrb[0].mxu0 %v347
  %v1481 = vpop.f32.mrb[0].mxu0
  %v1482 = vadd.f32 %v1225, %v1481
  %v1483 = vpop.f32.mrb[0].mxu0
  %v1484 = vadd.f32 %v1227, %v1483
  %1485 = vmatprep.mubr.f32.mxu0 %v351
  %1486 = vmatmul.mubr.f32.gmra.mrb[0].mxu0 %v350
  %v1487 = vpop.f32.mrb[0].mxu0
  %v1488 = vadd.f32 %v1231, %v1487
  %v1489 = vpop.f32.mrb[0].mxu0
  %v1490 = vadd.f32 %v1233, %v1489
  %1491 = vmatprep.mubr.f32.mxu0 %v354
  %1492 = vmatmul.mubr.f32.gmra.mrb[0].mxu0 %v353
  %v1493 = vpop.f32.mrb[0].mxu0
  %v1494 = vadd.f32 %v1237, %v1493
  %v1495 = vpop.f32.mrb[0].mxu0
  %v1496 = vadd.f32 %v1239, %v1495
  %1497 = vmatprep.mubr.f32.mxu0 %v357
  %1498 = vmatmul.mubr.f32.gmra.mrb[0].mxu0 %v356
  %v1499 = vpop.f32.mrb[0].mxu0
  %v1500 = vadd.f32 %v1243, %v1499
  %v1501 = vpop.f32.mrb[0].mxu0
  %v1502 = vadd.f32 %v1245, %v1501
  %1503 = vmatprep.mubr.f32.mxu0 %v360
  %1504 = vmatmul.mubr.f32.gmra.mrb[0].mxu0 %v359
  %v1505 = vpop.f32.mrb[0].mxu0
  %v1506 = vadd.f32 %v1249, %v1505
  %v1507 = vpop.f32.mrb[0].mxu0
  %v1508 = vadd.f32 %v1251, %v1507
  %1509 = vmatprep.mubr.f32.mxu0 %v363
  %1510 = vmatmul.mubr.f32.gmra.mrb[0].mxu0 %v362
  %v1511 = vpop.f32.mrb[0].mxu0
  %v1512 = vadd.f32 %v1255, %v1511
  %v1513 = vpop.f32.mrb[0].mxu0
  %v1514 = vadd.f32 %v1257, %v1513
  %1515 = vmatprep.mubr.f32.mxu0 %v366
  %1516 = vmatmul.mubr.f32.gmra.mrb[0].mxu0 %v365
  %v1517 = vpop.f32.mrb[0].mxu0
  %v1518 = vadd.f32 %v1261, %v1517
  %v1519 = vpop.f32.mrb[0].mxu0
  %v1520 = vadd.f32 %v1263, %v1519
  %1521 = vmatprep.mubr.f32.mxu0 %v369
  %1522 = vmatmul.mubr.f32.gmra.mrb[0].mxu0 %v368
  %v1523 = vpop.f32.mrb[0].mxu0
  %v1524 = vadd.f32 %v1267, %v1523
  %v1525 = vpop.f32.mrb[0].mxu0
  %v1526 = vadd.f32 %v1269, %v1525
  %1527 = vmatprep.mubr.f32.mxu0 %v372
  %1528 = vmatmul.mubr.f32.gmra.mrb[0].mxu0 %v371
  %v1529 = vpop.f32.mrb[0].mxu0
  %v1530 = vadd.f32 %v1273, %v1529
  %v1531 = vpop.f32.mrb[0].mxu0
  %v1532 = vadd.f32 %v1275, %v1531
  %1533 = vmatprep.mubr.f32.mxu0 %v375
  %1534 = vmatmul.mubr.f32.gmra.mrb[0].mxu0 %v374
  %v1535 = vpop.f32.mrb[0].mxu0
  %v1536 = vadd.f32 %v1279, %v1535
  %v1537 = vpop.f32.mrb[0].mxu0
  %v1538 = vadd.f32 %v1281, %v1537
  %1539 = vmatprep.mubr.f32.mxu0 %v378
  %1540 = vmatmul.mubr.f32.gmra.mrb[0].mxu0 %v377
  %v1541 = vpop.f32.mrb[0].mxu0
  %v1542 = vadd.f32 %v1285, %v1541
  %v1543 = vpop.f32.mrb[0].mxu0
  %v1544 = vadd.f32 %v1287, %v1543
  %1545 = vmatprep.mubr.f32.mxu0 %v381
  %1546 = vmatmul.mubr.f32.gmra.mrb[0].mxu0 %v380
  %v1547 = vpop.f32.mrb[0].mxu0
  %v1548 = vadd.f32 %v1291, %v1547
  %v1549 = vpop.f32.mrb[0].mxu0
  %v1550 = vadd.f32 %v1293, %v1549
  %1551 = vmatprep.mubr.f32.mxu0 %v384
  %1552 = vmatmul.mubr.f32.gmra.mrb[0].mxu0 %v383
  %v1553 = vpop.f32.mrb[0].mxu0
  %v1554 = vadd.f32 %v1297, %v1553
  %v1555 = vpop.f32.mrb[0].mxu0
  %v1556 = vadd.f32 %v1299, %v1555
  %1557 = vmatprep.mubr.f32.mxu0 %v387
  %1558 = vmatmul.mubr.f32.gmra.mrb[0].mxu0 %v386
  %v1559 = vpop.f32.mrb[0].mxu0
  %v1560 = vadd.f32 %v1303, %v1559
  %v1561 = vpop.f32.mrb[0].mxu0
  %v1562 = vadd.f32 %v1305, %v1561
  %1563 = vmatprep.mubr.f32.mxu0 %v390
  %1564 = vmatmul.mubr.f32.gmra.mrb[0].mxu0 %v389
  %v1565 = vpop.f32.mrb[0].mxu0
  %v1566 = vadd.f32 %v1309, %v1565
  %v1567 = vpop.f32.mrb[0].mxu0
  %v1568 = vadd.f32 %v1311, %v1567
  %1569 = vmatprep.mubr.f32.mxu0 %v393
  %1570 = vmatmul.mubr.f32.gmra.mrb[0].mxu0 %v392
  %v1571 = vpop.f32.mrb[0].mxu0
  %v1572 = vadd.f32 %v1315, %v1571
  %v1573 = vpop.f32.mrb[0].mxu0
  %v1574 = vadd.f32 %v1317, %v1573
  %1575 = vmatprep.mubr.f32.mxu0 %v396
  %1576 = vmatmul.mubr.f32.gmra.mrb[0].mxu0 %v395
  %v1577 = vpop.f32.mrb[0].mxu0
  %v1578 = vadd.f32 %v1321, %v1577
  %v1579 = vpop.f32.mrb[0].mxu0
  %v1580 = vadd.f32 %v1323, %v1579
  %1581 = vmatprep.mubr.f32.mxu0 %v399
  %1582 = vmatmul.mubr.f32.gmra.mrb[0].mxu0 %v398
  %v1583 = vpop.f32.mrb[0].mxu0
  %v1584 = vadd.f32 %v1327, %v1583
  %v1585 = vpop.f32.mrb[0].mxu0
  %v1586 = vadd.f32 %v1329, %v1585
  %1587 = vdwg.mxu0
  %1588 = vmatprep.subr.mxu0 %v466
  %1589 = vmatpush1.msra.mxu0 %v465
  %1590 = vmatprep.subr.mxu0 %v468
  %1591 = vmatpush1.msra.mxu0 %v467
  %1592 = vmatprep.subr.mxu0 %v470
  %1593 = vmatpush1.msra.mxu0 %v469
  %1594 = vmatprep.subr.mxu0 %v472
  %1595 = vmatpush1.msra.mxu0 %v471
  %1596 = vmatprep.subr.mxu0 %v474
  %1597 = vmatpush1.msra.mxu0 %v473
  %1598 = vmatprep.subr.mxu0 %v476
  %1599 = vmatpush1.msra.mxu0 %v475
  %1600 = vmatprep.subr.mxu0 %v478
  %1601 = vmatpush1.msra.mxu0 %v477
  %1602 = vmatprep.subr.mxu0 %v480
  %1603 = vmatpush1.msra.mxu0 %v479
  %1604 = vmatprep.subr.mxu0 %v482
  %1605 = vmatpush1.msra.mxu0 %v481
  %1606 = vmatprep.subr.mxu0 %v484
  %1607 = vmatpush1.msra.mxu0 %v483
  %1608 = vmatprep.subr.mxu0 %v486
  %1609 = vmatpush1.msra.mxu0 %v485
  %1610 = vmatprep.subr.mxu0 %v488
  %1611 = vmatpush1.msra.mxu0 %v487
  %1612 = vmatprep.subr.mxu0 %v490
  %1613 = vmatpush1.msra.mxu0 %v489
  %1614 = vmatprep.subr.mxu0 %v492
  %1615 = vmatpush1.msra.mxu0 %v491
  %1616 = vmatprep.subr.mxu0 %v494
  %1617 = vmatpush1.msra.mxu0 %v493
  %1618 = vmatprep.subr.mxu0 %v496
  %1619 = vmatpush1.msra.mxu0 %v495
  %1620 = vmatprep.subr.mxu0 0.0
  %1621 = vmatpush1.msra.mxu0 0.0
  %1622 = vmatprep.subr.mxu0 0.0
  %1623 = vmatpush1.msra.mxu0 0.0
  %1624 = vmatprep.subr.mxu0 0.0
  %1625 = vmatpush1.msra.mxu0 0.0
  %1626 = vmatprep.subr.mxu0 0.0
  %1627 = vmatpush1.msra.mxu0 0.0
  %1628 = vmatprep.subr.mxu0 0.0
  %1629 = vmatpush1.msra.mxu0 0.0
  %1630 = vmatprep.subr.mxu0 0.0
  %1631 = vmatpush1.msra.mxu0 0.0
  %1632 = vmatprep.subr.mxu0 0.0
  %1633 = vmatpush1.msra.mxu0 0.0
  %1634 = vmatprep.subr.mxu0 0.0
  %1635 = vmatpush1.msra.mxu0 0.0
  %1636 = vmatprep.subr.mxu0 0.0
  %1637 = vmatpush1.msra.mxu0 0.0
  %1638 = vmatprep.subr.mxu0 0.0
  %1639 = vmatpush1.msra.mxu0 0.0
  %1640 = vmatprep.subr.mxu0 0.0
  %1641 = vmatpush1.msra.mxu0 0.0
  %1642 = vmatprep.subr.mxu0 0.0
  %1643 = vmatpush1.msra.mxu0 0.0
  %1644 = vmatprep.subr.mxu0 0.0
  %1645 = vmatpush1.msra.mxu0 0.0
  %1646 = vmatprep.subr.mxu0 0.0
  %1647 = vmatpush1.msra.mxu0 0.0
  %1648 = vmatprep.subr.mxu0 0.0
  %1649 = vmatpush1.msra.mxu0 0.0
  %1650 = vmatprep.subr.mxu0 0.0
  %1651 = vmatpush1.msra.mxu0 0.0
  %1652 = vmatprep.mubr.f32.mxu0 0.0
  %1653 = vmatmul.mubr.f32.gmra.mrb[0].mxu0 %v307
  %v1654 = vpop.f32.mrb[0].mxu0
  %v1655 = vadd.f32 %v1398, %v1654
  %v1656 = vpop.f32.mrb[0].mxu0
  %v1657 = vadd.f32 %v1400, %v1656
  %1658 = vmatprep.mubr.f32.mxu0 0.0
  %1659 = vmatmul.mubr.f32.gmra.mrb[0].mxu0 %v310
  %v1660 = vpop.f32.mrb[0].mxu0
  %v1661 = vadd.f32 %v1404, %v1660
  %v1662 = vpop.f32.mrb[0].mxu0
  %v1663 = vadd.f32 %v1406, %v1662
  %1664 = vmatprep.mubr.f32.mxu0 0.0
  %1665 = vmatmul.mubr.f32.gmra.mrb[0].mxu0 %v313
  %v1666 = vpop.f32.mrb[0].mxu0
  %v1667 = vadd.f32 %v1410, %v1666
  %v1668 = vpop.f32.mrb[0].mxu0
  %v1669 = vadd.f32 %v1412, %v1668
  %1670 = vmatprep.mubr.f32.mxu0 0.0
  %1671 = vmatmul.mubr.f32.gmra.mrb[0].mxu0 %v316
  %v1672 = vpop.f32.mrb[0].mxu0
  %v1673 = vadd.f32 %v1416, %v1672
  %v1674 = vpop.f32.mrb[0].mxu0
  %v1675 = vadd.f32 %v1418, %v1674
  %1676 = vmatprep.mubr.f32.mxu0 0.0
  %1677 = vmatmul.mubr.f32.gmra.mrb[0].mxu0 %v319
  %v1678 = vpop.f32.mrb[0].mxu0
  %v1679 = vadd.f32 %v1422, %v1678
  %v1680 = vpop.f32.mrb[0].mxu0
  %v1681 = vadd.f32 %v1424, %v1680
  %1682 = vmatprep.mubr.f32.mxu0 0.0
  %1683 = vmatmul.mubr.f32.gmra.mrb[0].mxu0 %v322
  %v1684 = vpop.f32.mrb[0].mxu0
  %v1685 = vadd.f32 %v1428, %v1684
  %v1686 = vpop.f32.mrb[0].mxu0
  %v1687 = vadd.f32 %v1430, %v1686
  %1688 = vmatprep.mubr.f32.mxu0 0.0
  %1689 = vmatmul.mubr.f32.gmra.mrb[0].mxu0 %v325
  %v1690 = vpop.f32.mrb[0].mxu0
  %v1691 = vadd.f32 %v1434, %v1690
  %v1692 = vpop.f32.mrb[0].mxu0
  %v1693 = vadd.f32 %v1436, %v1692
  %1694 = vmatprep.mubr.f32.mxu0 0.0
  %1695 = vmatmul.mubr.f32.gmra.mrb[0].mxu0 %v328
  %v1696 = vpop.f32.mrb[0].mxu0
  %v1697 = vadd.f32 %v1440, %v1696
  %v1698 = vpop.f32.mrb[0].mxu0
  %v1699 = vadd.f32 %v1442, %v1698
  %1700 = vmatprep.mubr.f32.mxu0 0.0
  %1701 = vmatmul.mubr.f32.gmra.mrb[0].mxu0 %v331
  %v1702 = vpop.f32.mrb[0].mxu0
  %v1703 = vadd.f32 %v1446, %v1702
  %v1704 = vpop.f32.mrb[0].mxu0
  %v1705 = vadd.f32 %v1448, %v1704
  %1706 = vmatprep.mubr.f32.mxu0 0.0
  %1707 = vmatmul.mubr.f32.gmra.mrb[0].mxu0 %v334
  %v1708 = vpop.f32.mrb[0].mxu0
  %v1709 = vadd.f32 %v1452, %v1708
  %v1710 = vpop.f32.mrb[0].mxu0
  %v1711 = vadd.f32 %v1454, %v1710
  %1712 = vmatprep.mubr.f32.mxu0 0.0
  %1713 = vmatmul.mubr.f32.gmra.mrb[0].mxu0 %v337
  %v1714 = vpop.f32.mrb[0].mxu0
  %v1715 = vadd.f32 %v1458, %v1714
  %v1716 = vpop.f32.mrb[0].mxu0
  %v1717 = vadd.f32 %v1460, %v1716
  %1718 = vmatprep.mubr.f32.mxu0 0.0
  %1719 = vmatmul.mubr.f32.gmra.mrb[0].mxu0 %v340
  %v1720 = vpop.f32.mrb[0].mxu0
  %v1721 = vadd.f32 %v1464, %v1720
  %v1722 = vpop.f32.mrb[0].mxu0
  %v1723 = vadd.f32 %v1466, %v1722
  %1724 = vmatprep.mubr.f32.mxu0 0.0
  %1725 = vmatmul.mubr.f32.gmra.mrb[0].mxu0 %v343
  %v1726 = vpop.f32.mrb[0].mxu0
  %v1727 = vadd.f32 %v1470, %v1726
  %v1728 = vpop.f32.mrb[0].mxu0
  %v1729 = vadd.f32 %v1472, %v1728
  %1730 = vmatprep.mubr.f32.mxu0 0.0
  %1731 = vmatmul.mubr.f32.gmra.mrb[0].mxu0 %v346
  %v1732 = vpop.f32.mrb[0].mxu0
  %v1733 = vadd.f32 %v1476, %v1732
  %v1734 = vpop.f32.mrb[0].mxu0
  %v1735 = vadd.f32 %v1478, %v1734
  %1736 = vmatprep.mubr.f32.mxu0 0.0
  %1737 = vmatmul.mubr.f32.gmra.mrb[0].mxu0 %v349
  %v1738 = vpop.f32.mrb[0].mxu0
  %v1739 = vadd.f32 %v1482, %v1738
  %v1740 = vpop.f32.mrb[0].mxu0
  %v1741 = vadd.f32 %v1484, %v1740
  %1742 = vmatprep.mubr.f32.mxu0 0.0
  %1743 = vmatmul.mubr.f32.gmra.mrb[0].mxu0 %v352
  %v1744 = vpop.f32.mrb[0].mxu0
  %v1745 = vadd.f32 %v1488, %v1744
  %v1746 = vpop.f32.mrb[0].mxu0
  %v1747 = vadd.f32 %v1490, %v1746
  %1748 = vmatprep.mubr.f32.mxu0 0.0
  %1749 = vmatmul.mubr.f32.gmra.mrb[0].mxu0 %v355
  %v1750 = vpop.f32.mrb[0].mxu0
  %v1751 = vadd.f32 %v1494, %v1750
  %v1752 = vpop.f32.mrb[0].mxu0
  %v1753 = vadd.f32 %v1496, %v1752
  %1754 = vmatprep.mubr.f32.mxu0 0.0
  %1755 = vmatmul.mubr.f32.gmra.mrb[0].mxu0 %v358
  %v1756 = vpop.f32.mrb[0].mxu0
  %v1757 = vadd.f32 %v1500, %v1756
  %v1758 = vpop.f32.mrb[0].mxu0
  %v1759 = vadd.f32 %v1502, %v1758
  %1760 = vmatprep.mubr.f32.mxu0 0.0
  %1761 = vmatmul.mubr.f32.gmra.mrb[0].mxu0 %v361
  %v1762 = vpop.f32.mrb[0].mxu0
  %v1763 = vadd.f32 %v1506, %v1762
  %v1764 = vpop.f32.mrb[0].mxu0
  %v1765 = vadd.f32 %v1508, %v1764
  %1766 = vmatprep.mubr.f32.mxu0 0.0
  %1767 = vmatmul.mubr.f32.gmra.mrb[0].mxu0 %v364
  %v1768 = vpop.f32.mrb[0].mxu0
  %v1769 = vadd.f32 %v1512, %v1768
  %v1770 = vpop.f32.mrb[0].mxu0
  %v1771 = vadd.f32 %v1514, %v1770
  %1772 = vmatprep.mubr.f32.mxu0 0.0
  %1773 = vmatmul.mubr.f32.gmra.mrb[0].mxu0 %v367
  %v1774 = vpop.f32.mrb[0].mxu0
  %v1775 = vadd.f32 %v1518, %v1774
  %v1776 = vpop.f32.mrb[0].mxu0
  %v1777 = vadd.f32 %v1520, %v1776
  %1778 = vmatprep.mubr.f32.mxu0 0.0
  %1779 = vmatmul.mubr.f32.gmra.mrb[0].mxu0 %v370
  %v1780 = vpop.f32.mrb[0].mxu0
  %v1781 = vadd.f32 %v1524, %v1780
  %v1782 = vpop.f32.mrb[0].mxu0
  %v1783 = vadd.f32 %v1526, %v1782
  %1784 = vmatprep.mubr.f32.mxu0 0.0
  %1785 = vmatmul.mubr.f32.gmra.mrb[0].mxu0 %v373
  %v1786 = vpop.f32.mrb[0].mxu0
  %v1787 = vadd.f32 %v1530, %v1786
  %v1788 = vpop.f32.mrb[0].mxu0
  %v1789 = vadd.f32 %v1532, %v1788
  %1790 = vmatprep.mubr.f32.mxu0 0.0
  %1791 = vmatmul.mubr.f32.gmra.mrb[0].mxu0 %v376
  %v1792 = vpop.f32.mrb[0].mxu0
  %v1793 = vadd.f32 %v1536, %v1792
  %v1794 = vpop.f32.mrb[0].mxu0
  %v1795 = vadd.f32 %v1538, %v1794
  %1796 = vmatprep.mubr.f32.mxu0 0.0
  %1797 = vmatmul.mubr.f32.gmra.mrb[0].mxu0 %v379
  %v1798 = vpop.f32.mrb[0].mxu0
  %v1799 = vadd.f32 %v1542, %v1798
  %v1800 = vpop.f32.mrb[0].mxu0
  %v1801 = vadd.f32 %v1544, %v1800
  %1802 = vmatprep.mubr.f32.mxu0 0.0
  %1803 = vmatmul.mubr.f32.gmra.mrb[0].mxu0 %v382
  %v1804 = vpop.f32.mrb[0].mxu0
  %v1805 = vadd.f32 %v1548, %v1804
  %v1806 = vpop.f32.mrb[0].mxu0
  %v1807 = vadd.f32 %v1550, %v1806
  %1808 = vmatprep.mubr.f32.mxu0 0.0
  %1809 = vmatmul.mubr.f32.gmra.mrb[0].mxu0 %v385
  %v1810 = vpop.f32.mrb[0].mxu0
  %v1811 = vadd.f32 %v1554, %v1810
  %v1812 = vpop.f32.mrb[0].mxu0
  %v1813 = vadd.f32 %v1556, %v1812
  %1814 = vmatprep.mubr.f32.mxu0 0.0
  %1815 = vmatmul.mubr.f32.gmra.mrb[0].mxu0 %v388
  %v1816 = vpop.f32.mrb[0].mxu0
  %v1817 = vadd.f32 %v1560, %v1816
  %v1818 = vpop.f32.mrb[0].mxu0
  %v1819 = vadd.f32 %v1562, %v1818
  %1820 = vmatprep.mubr.f32.mxu0 0.0
  %1821 = vmatmul.mubr.f32.gmra.mrb[0].mxu0 %v391
  %v1822 = vpop.f32.mrb[0].mxu0
  %v1823 = vadd.f32 %v1566, %v1822
  %v1824 = vpop.f32.mrb[0].mxu0
  %v1825 = vadd.f32 %v1568, %v1824
  %1826 = vmatprep.mubr.f32.mxu0 0.0
  %1827 = vmatmul.mubr.f32.gmra.mrb[0].mxu0 %v394
  %v1828 = vpop.f32.mrb[0].mxu0
  %v1829 = vadd.f32 %v1572, %v1828
  %v1830 = vpop.f32.mrb[0].mxu0
  %v1831 = vadd.f32 %v1574, %v1830
  %1832 = vmatprep.mubr.f32.mxu0 0.0
  %1833 = vmatmul.mubr.f32.gmra.mrb[0].mxu0 %v397
  %v1834 = vpop.f32.mrb[0].mxu0
  %v1835 = vadd.f32 %v1578, %v1834
  %v1836 = vpop.f32.mrb[0].mxu0
  %v1837 = vadd.f32 %v1580, %v1836
  %1838 = vmatprep.mubr.f32.mxu0 0.0
  %1839 = vmatmul.mubr.f32.gmra.mrb[0].mxu0 %v400
  %v1840 = vpop.f32.mrb[0].mxu0
  %v1841 = vadd.f32 %v1584, %v1840
  %v1842 = vpop.f32.mrb[0].mxu0
  %v1843 = vadd.f32 %v1586, %v1842
  %1844 = vdwg.mxu0
  %1845 = vst [vmem:[%s4] sm:$0xff] %v1655
  %vm1846 = vcmask 556032
  %1847 = vst.msk [vmem:[%s4 + $0x8] sm:$0xff] %vm1846, %v1657
  %1848 = vst [vmem:[%s4 + $0x10] sm:$0xff] %v1661
  %1849 = vst.msk [vmem:[%s4 + $0x18] sm:$0xff] %vm1846, %v1663
  %1850 = vst [vmem:[%s4 + $0x20] sm:$0xff] %v1667
  %1851 = vst.msk [vmem:[%s4 + $0x28] sm:$0xff] %vm1846, %v1669
  %1852 = vst [vmem:[%s4 + $0x30] sm:$0xff] %v1673
  %1853 = vst.msk [vmem:[%s4 + $0x38] sm:$0xff] %vm1846, %v1675
  %1854 = vst [vmem:[%s4 + $0x40] sm:$0xff] %v1679
  %1855 = vst.msk [vmem:[%s4 + $0x48] sm:$0xff] %vm1846, %v1681
  %1856 = vst [vmem:[%s4 + $0x50] sm:$0xff] %v1685
  %1857 = vst.msk [vmem:[%s4 + $0x58] sm:$0xff] %vm1846, %v1687
  %1858 = vst [vmem:[%s4 + $0x60] sm:$0xff] %v1691
  %1859 = vst.msk [vmem:[%s4 + $0x68] sm:$0xff] %vm1846, %v1693
  %1860 = vst [vmem:[%s4 + $0x70] sm:$0xff] %v1697
  %1861 = vst.msk [vmem:[%s4 + $0x78] sm:$0xff] %vm1846, %v1699
  %1862 = vst [vmem:[%s4 + $0x80] sm:$0xff] %v1703
  %1863 = vst.msk [vmem:[%s4 + $0x88] sm:$0xff] %vm1846, %v1705
  %1864 = vst [vmem:[%s4 + $0x90] sm:$0xff] %v1709
  %1865 = vst.msk [vmem:[%s4 + $0x98] sm:$0xff] %vm1846, %v1711
  %1866 = vst [vmem:[%s4 + $0xa0] sm:$0xff] %v1715
  %1867 = vst.msk [vmem:[%s4 + $0xa8] sm:$0xff] %vm1846, %v1717
  %1868 = vst [vmem:[%s4 + $0xb0] sm:$0xff] %v1721
  %1869 = vst.msk [vmem:[%s4 + $0xb8] sm:$0xff] %vm1846, %v1723
  %1870 = vst [vmem:[%s4 + $0xc0] sm:$0xff] %v1727
  %1871 = vst.msk [vmem:[%s4 + $0xc8] sm:$0xff] %vm1846, %v1729
  %1872 = vst [vmem:[%s4 + $0xd0] sm:$0xff] %v1733
  %1873 = vst.msk [vmem:[%s4 + $0xd8] sm:$0xff] %vm1846, %v1735
  %1874 = vst [vmem:[%s4 + $0xe0] sm:$0xff] %v1739
  %1875 = vst.msk [vmem:[%s4 + $0xe8] sm:$0xff] %vm1846, %v1741
  %1876 = vst [vmem:[%s4 + $0xf0] sm:$0xff] %v1745
  %1877 = vst.msk [vmem:[%s4 + $0xf8] sm:$0xff] %vm1846, %v1747
  %1878 = vst [vmem:[%s4 + $0x100] sm:$0xff] %v1751
  %1879 = vst.msk [vmem:[%s4 + $0x108] sm:$0xff] %vm1846, %v1753
  %1880 = vst [vmem:[%s4 + $0x110] sm:$0xff] %v1757
  %1881 = vst.msk [vmem:[%s4 + $0x118] sm:$0xff] %vm1846, %v1759
  %1882 = vst [vmem:[%s4 + $0x120] sm:$0xff] %v1763
  %1883 = vst.msk [vmem:[%s4 + $0x128] sm:$0xff] %vm1846, %v1765
  %1884 = vst [vmem:[%s4 + $0x130] sm:$0xff] %v1769
  %1885 = vst.msk [vmem:[%s4 + $0x138] sm:$0xff] %vm1846, %v1771
  %1886 = vst [vmem:[%s4 + $0x140] sm:$0xff] %v1775
  %1887 = vst.msk [vmem:[%s4 + $0x148] sm:$0xff] %vm1846, %v1777
  %1888 = vst [vmem:[%s4 + $0x150] sm:$0xff] %v1781
  %1889 = vst.msk [vmem:[%s4 + $0x158] sm:$0xff] %vm1846, %v1783
  %1890 = vst [vmem:[%s4 + $0x160] sm:$0xff] %v1787
  %1891 = vst.msk [vmem:[%s4 + $0x168] sm:$0xff] %vm1846, %v1789
  %1892 = vst [vmem:[%s4 + $0x170] sm:$0xff] %v1793
  %1893 = vst.msk [vmem:[%s4 + $0x178] sm:$0xff] %vm1846, %v1795
  %1894 = vst [vmem:[%s4 + $0x180] sm:$0xff] %v1799
  %1895 = vst.msk [vmem:[%s4 + $0x188] sm:$0xff] %vm1846, %v1801
  %1896 = vst [vmem:[%s4 + $0x190] sm:$0xff] %v1805
  %1897 = vst.msk [vmem:[%s4 + $0x198] sm:$0xff] %vm1846, %v1807
  %1898 = vst [vmem:[%s4 + $0x1a0] sm:$0xff] %v1811
  %1899 = vst.msk [vmem:[%s4 + $0x1a8] sm:$0xff] %vm1846, %v1813
  %1900 = vst [vmem:[%s4 + $0x1b0] sm:$0xff] %v1817
  %1901 = vst.msk [vmem:[%s4 + $0x1b8] sm:$0xff] %vm1846, %v1819
  %1902 = vst [vmem:[%s4 + $0x1c0] sm:$0xff] %v1823
  %1903 = vst.msk [vmem:[%s4 + $0x1c8] sm:$0xff] %vm1846, %v1825
  %1904 = vst [vmem:[%s4 + $0x1d0] sm:$0xff] %v1829
  %1905 = vst.msk [vmem:[%s4 + $0x1d8] sm:$0xff] %vm1846, %v1831
  %1906 = vst [vmem:[%s4 + $0x1e0] sm:$0xff] %v1835
  %1907 = vst.msk [vmem:[%s4 + $0x1e8] sm:$0xff] %vm1846, %v1837
  %1908 = vst [vmem:[%s4 + $0x1f0] sm:$0xff] %v1841
  %1909 = vst.msk [vmem:[%s4 + $0x1f8] sm:$0xff] %vm1846, %v1843
  // Predicated region
  $region18: #{forward.1} parent=0 // pred_check
    _
  $region19: #{forward.1} parent=0 // pred_check_branch
    %1911 = sbr.rel (0) target = $region21
  $region20: #{forward.1} parent=0 // pred_region
    _
  $region21: #{forward.1} parent=0 // pred_fallthru
    _
  // Predicated region
  $region22: #{forward.1} parent=0 // pred_check
    _
  $region23: #{forward.1} parent=0 // pred_check_branch
    %1913 = sbr.rel (0) target = $region25
  $region24: #{forward.1} parent=0 // pred_region
    _
  $region25: #{forward.1} parent=0 // pred_fallthru
    _

</llo_original>
